<compile_context>
chip_gen: v5e
topology: v5e:2x2
jax: 0.10.0
libtpu: 0.0.40
codegen_flags: <defaults>
</compile_context>

<pallas_src>
import jax
import jax.numpy as jnp
from jax.experimental import pallas as pl
from jax.experimental.pallas import tpu as pltpu


def _gated_attention_kernel(x_ref, wuv_ref, buv_ref, wa_ref, o_ref):
    Bt, N, C = x_ref.shape
    Hp2 = wuv_ref.shape[1]
    Hp = Hp2 // 2

    x = x_ref[...]                                # (Bt, N, C), streamed dtype
    xf = x.reshape(Bt * N, C)

    # Fused u/v projection: one MXU matmul in the streamed dtype, f32 accum.
    uv = jnp.dot(xf, wuv_ref[...], preferred_element_type=jnp.float32)
    uv = uv + buv_ref[...]                        # (Bt*N, 2*Hp) f32

    # Single EUP pass: sigmoid(z) = 0.5*tanh(z/2) + 0.5; the 0.5 scale was
    # folded into the Wv/bv half by the wrapper.  Padded lanes: tanh(0)=0 on
    # the u half, so g is exactly 0 there.
    t = jnp.tanh(uv)
    u = t[:, :Hp]                                 # lane-aligned slice (Hp % 128 == 0)
    v = 0.5 * t[:, Hp:] + 0.5
    g = u * v                                     # (Bt*N, Hp)

    # Attention logits: VPU multiply + lane reduce (no degenerate (N,H)@(H,1)
    # matmul).  attn bias ba dropped — softmax(a + ba) == softmax(a).
    a = jnp.sum(g * wa_ref[...], axis=-1, keepdims=True)   # (Bt*N, 1)
    a = a.reshape(Bt, N, 1)

    # Numerically-stable softmax over the instance axis N (sublane reduce).
    m = jnp.max(a, axis=1, keepdims=True)         # (Bt, 1, 1)
    e = jnp.exp(a - m)                            # (Bt, N, 1)
    s = jnp.sum(e, axis=1)                        # (Bt, 1)

    # Weighted pooling in f32 (upcast immediately after the load: v5e-safe).
    xf32 = x.astype(jnp.float32)
    pooled = jnp.sum(e * xf32, axis=1)            # (Bt, C)

    # Normalize once on the (Bt, C) output; approx reciprocal = free EUP slot.
    res = pooled * pl.reciprocal(s, approx=True)
    o_ref[...] = res.astype(o_ref.dtype)[None, :, :]


def _default_vmem_limit_bytes():
    # ~48 MiB on v7x (64 MiB physical VMEM), ~100 MiB on v5e/v6e (128 MiB).
    try:
        cap = int(pltpu.get_tpu_info().vmem_capacity_bytes)
    except Exception:
        cap = 64 << 20  # conservative (v7x-sized) fallback
    return max(32 << 20, min(cap - (16 << 20), 100 << 20))


def instance_gated_attention(x, wu, bu, wv, bv, wa, *,
                             vmem_limit_bytes=None, min_grid=2):
    """Gated-attention MIL pooling.

    x : (B, N, C)   — streamed in its own dtype (pass bf16 on v6e/v7x)
    wu, wv : (H, C) — PyTorch Linear weights (out, in), H = C // reduction
    bu, bv : (H,)
    wa : (1, H)     — the attn bias ba is a softmax no-op and omitted
    Returns (B, C) in x.dtype.
    """
    B, N, C = x.shape
    H = wu.shape[0]
    Hp = ((H + 127) // 128) * 128                 # lane-align each projection half
    Hp2 = 2 * Hp
    stream_dtype = x.dtype

    # Pack + zero-pad the projections: [ Wu^T | 0 | 0.5*Wv^T | 0 ]  (C, 2*Hp).
    wuv = jnp.zeros((C, Hp2), jnp.float32)
    wuv = wuv.at[:, :H].set(wu.astype(jnp.float32).T)
    wuv = wuv.at[:, Hp:Hp + H].set(0.5 * wv.astype(jnp.float32).T)
    wuv = wuv.astype(stream_dtype)                # MXU operand dtype matches x
    buv = jnp.zeros((1, Hp2), jnp.float32)
    buv = buv.at[0, :H].set(bu.astype(jnp.float32))
    buv = buv.at[0, Hp:Hp + H].set(0.5 * bv.astype(jnp.float32))
    wa_row = jnp.zeros((1, Hp), jnp.float32)
    wa_row = wa_row.at[0, :H].set(wa.reshape(-1).astype(jnp.float32))

    if vmem_limit_bytes is None:
        vmem_limit_bytes = _default_vmem_limit_bytes()

    # Batch-tile selection: as many bags per grid step as the VMEM budget
    # allows (double-buffered streamed x tile + f32 working set), while keeping
    # at least `min_grid` grid steps (v7x megacore) and requiring Bt | B so no
    # jnp.pad / remainder pass over x is needed.
    itemsize = jnp.dtype(stream_dtype).itemsize
    per_b = N * C * (2 * itemsize + 8) + N * Hp2 * 8      # bytes per batch row
    budget = int(vmem_limit_bytes * 0.6)
    bt_cap = max(1, min(B, budget // per_b))
    if B >= min_grid:
        bt_cap = min(bt_cap, max(1, B // min_grid))
    Bt = 1
    for d in range(1, bt_cap + 1):
        if B % d == 0:
            Bt = d
    nb = B // Bt

    out = pl.pallas_call(
        _gated_attention_kernel,
        out_shape=jax.ShapeDtypeStruct((nb, Bt, C), x.dtype),
        grid_spec=pltpu.PrefetchScalarGridSpec(
            num_scalar_prefetch=0,
            grid=(nb,),
            in_specs=[
                pl.BlockSpec((Bt, N, C), lambda b: (b, 0, 0)),   # x tile
                pl.BlockSpec((C, Hp2), lambda b: (0, 0)),        # [Wu^T | 0.5*Wv^T]
                pl.BlockSpec((1, Hp2), lambda b: (0, 0)),        # [bu | 0.5*bv]
                pl.BlockSpec((1, Hp), lambda b: (0, 0)),         # wa row
            ],
            out_specs=pl.BlockSpec((1, Bt, C), lambda b: (b, 0, 0)),
        ),
        compiler_params=pltpu.CompilerParams(
            dimension_semantics=("parallel",),
            vmem_limit_bytes=int(vmem_limit_bytes)),
    )(x, wuv, buv, wa_row)
    return out.reshape(B, C)


def reference_jax(x, wu, bu, wv, bv, wa, ba):
    """Pure-JAX reference matching the PyTorch forward (ba included)."""
    B, N, C = x.shape
    xf = x.astype(jnp.float32).reshape(-1, C)
    u = jnp.tanh(xf @ wu.T + bu)
    v = jax.nn.sigmoid(xf @ wv.T + bv)
    a = ((u * v) @ wa.T + ba).reshape(B, N)
    w = jax.nn.softmax(a, axis=1)
    return jnp.einsum("bnc,bn->bc", x.astype(jnp.float32), w)


if __name__ == "__main__":
    # Small but tile-friendly MIL shapes: B bags of N instances, C channels.
    B, N, C, reduction = 16, 32, 256, 16
    H = C // reduction  # 16

    key = jax.random.PRNGKey(0)
    kx, k1, k2, k3, k4, k5, k6 = jax.random.split(key, 7)

    x = jax.random.normal(kx, (B, N, C), dtype=jnp.float32)
    # PyTorch Linear shapes: weight (out, in), bias (out,).
    wu = jax.random.normal(k1, (H, C), dtype=jnp.float32) * 0.1
    bu = jax.random.normal(k2, (H,), dtype=jnp.float32) * 0.1
    wv = jax.random.normal(k3, (H, C), dtype=jnp.float32) * 0.1
    bv = jax.random.normal(k4, (H,), dtype=jnp.float32) * 0.1
    wa = jax.random.normal(k5, (1, H), dtype=jnp.float32) * 0.1
    ba = jax.random.normal(k6, (1,), dtype=jnp.float32) * 0.1

    # Reference keeps ba; the kernel drops it (softmax shift invariance), so
    # agreement also validates that simplification.
    ref = reference_jax(x, wu, bu, wv, bv, wa, ba)

    # f32 streaming path.
    out_f32 = jax.block_until_ready(
        instance_gated_attention(x, wu, bu, wv, bv, wa))
    assert out_f32.shape == (B, C)
    assert jnp.allclose(out_f32, ref, atol=5e-3, rtol=5e-3), (
        f"f32 max abs diff {jnp.max(jnp.abs(out_f32 - ref))}")

    # bf16 streaming path (halves HBM traffic on this memory-bound kernel).
    out_bf16 = jax.block_until_ready(
        instance_gated_attention(x.astype(jnp.bfloat16), wu, bu, wv, bv, wa))
    assert out_bf16.shape == (B, C)
    diff = jnp.max(jnp.abs(out_bf16.astype(jnp.float32) - ref))
    assert jnp.allclose(out_bf16.astype(jnp.float32), ref,
                        atol=6e-2, rtol=6e-2), f"bf16 max abs diff {diff}"

    print("KERNEL_OK")
</pallas_src>

<mosaic_0001>
module attributes {stable_mosaic.version = 11 : i64} {
  func.func @_gated_attention_kernel(%arg0: i32, %arg1: memref<8x32x256xf32, #tpu.memory_space<vmem>>, %arg2: memref<256x256xf32, #tpu.memory_space<vmem>>, %arg3: memref<1x256xf32, #tpu.memory_space<vmem>>, %arg4: memref<1x128xf32, #tpu.memory_space<vmem>>, %arg5: memref<1x8x256xf32, #tpu.memory_space<vmem>>) attributes {dimension_semantics = [#tpu.dimension_semantics<parallel>], iteration_bounds = array<i64: 2>, scalar_prefetch = 0 : i64, scratch_operands = 0 : i64, tpu.core_type = #tpu.core_type<tc>, window_params = [{transform_indices = @transform_0, window_bounds = array<i64: 8, 32, 256>}, {pipeline_mode = #tpu.pipeline_mode<synchronous>, transform_indices = @transform_1, window_bounds = array<i64: 256, 256>}, {pipeline_mode = #tpu.pipeline_mode<synchronous>, transform_indices = @transform_2, window_bounds = array<i64: 1, 256>}, {pipeline_mode = #tpu.pipeline_mode<synchronous>, transform_indices = @transform_3, window_bounds = array<i64: 1, 128>}, {transform_indices = @transform_4, window_bounds = array<i64: 1, 8, 256>}]} {
    %c0 = arith.constant 0 : index
    %c0_0 = arith.constant 0 : index
    %c0_1 = arith.constant 0 : index
    %0 = vector.load %arg1[%c0, %c0_0, %c0_1] : memref<8x32x256xf32, #tpu.memory_space<vmem>>, vector<8x32x256xf32>
    %1 = vector.shape_cast %0 : vector<8x32x256xf32> to vector<256x256xf32>
    %c0_2 = arith.constant 0 : index
    %c0_3 = arith.constant 0 : index
    %2 = vector.load %arg2[%c0_2, %c0_3] : memref<256x256xf32, #tpu.memory_space<vmem>>, vector<256x256xf32>
    %cst = arith.constant dense<0.000000e+00> : vector<256x256xf32>
    %3 = tpu.matmul %1, %2, %cst {dimension_numbers = #tpu.dot_dimension_numbers<[1], [0], [0], [1], [0, 0, 1, 1], [], []>} : vector<256x256xf32>, vector<256x256xf32>, vector<256x256xf32> -> vector<256x256xf32>
    %c0_4 = arith.constant 0 : index
    %c0_5 = arith.constant 0 : index
    %4 = vector.load %arg3[%c0_4, %c0_5] : memref<1x256xf32, #tpu.memory_space<vmem>>, vector<1x256xf32>
    %5 = vector.broadcast %4 : vector<1x256xf32> to vector<256x256xf32>
    %6 = arith.addf %3, %5 : vector<256x256xf32>
    %7 = math.tanh %6 : vector<256x256xf32>
    %8 = vector.extract_strided_slice %7 {offsets = [0, 0], sizes = [256, 128], strides = [1, 1]} : vector<256x256xf32> to vector<256x128xf32>
    %9 = vector.extract_strided_slice %7 {offsets = [0, 128], sizes = [256, 128], strides = [1, 1]} : vector<256x256xf32> to vector<256x128xf32>
    %cst_6 = arith.constant 5.000000e-01 : f32
    %10 = vector.broadcast %cst_6 : f32 to vector<256x128xf32>
    %11 = arith.mulf %10, %9 : vector<256x128xf32>
    %cst_7 = arith.constant 5.000000e-01 : f32
    %12 = vector.broadcast %cst_7 : f32 to vector<256x128xf32>
    %13 = arith.addf %11, %12 : vector<256x128xf32>
    %14 = arith.mulf %8, %13 : vector<256x128xf32>
    %c0_8 = arith.constant 0 : index
    %c0_9 = arith.constant 0 : index
    %15 = vector.load %arg4[%c0_8, %c0_9] : memref<1x128xf32, #tpu.memory_space<vmem>>, vector<1x128xf32>
    %16 = vector.broadcast %15 : vector<1x128xf32> to vector<256x128xf32>
    %17 = arith.mulf %14, %16 : vector<256x128xf32>
    %cst_10 = arith.constant dense<0.000000e+00> : vector<256xf32>
    %18 = vector.multi_reduction <add>, %17, %cst_10 [1] : vector<256x128xf32> to vector<256xf32>
    %19 = vector.shape_cast %18 : vector<256xf32> to vector<256x1xf32>
    %20 = vector.shape_cast %19 : vector<256x1xf32> to vector<8x32x1xf32>
    %cst_11 = arith.constant dense<0xFF800000> : vector<8x1xf32>
    %21 = vector.multi_reduction <maximumf>, %20, %cst_11 [1] : vector<8x32x1xf32> to vector<8x1xf32>
    %22 = vector.shape_cast %21 : vector<8x1xf32> to vector<8x1x1xf32>
    %23 = vector.broadcast %22 : vector<8x1x1xf32> to vector<8x32x1xf32>
    %24 = arith.subf %20, %23 : vector<8x32x1xf32>
    %25 = math.exp %24 : vector<8x32x1xf32>
    %cst_12 = arith.constant dense<0.000000e+00> : vector<8x1xf32>
    %26 = vector.multi_reduction <add>, %25, %cst_12 [1] : vector<8x32x1xf32> to vector<8x1xf32>
    %27 = vector.broadcast %25 : vector<8x32x1xf32> to vector<8x32x256xf32>
    %28 = arith.mulf %27, %0 : vector<8x32x256xf32>
    %cst_13 = arith.constant dense<0.000000e+00> : vector<8x256xf32>
    %29 = vector.multi_reduction <add>, %28, %cst_13 [1] : vector<8x32x256xf32> to vector<8x256xf32>
    %30 = tpu.reciprocal %26 {approx = true} : vector<8x1xf32> -> vector<8x1xf32>
    %31 = vector.broadcast %30 : vector<8x1xf32> to vector<8x256xf32>
    %32 = arith.mulf %29, %31 : vector<8x256xf32>
    %33 = vector.shape_cast %32 : vector<8x256xf32> to vector<1x8x256xf32>
    %c0_14 = arith.constant 0 : index
    %c0_15 = arith.constant 0 : index
    %c0_16 = arith.constant 0 : index
    %34 = vector.load %arg5[%c0_14, %c0_15, %c0_16] : memref<1x8x256xf32, #tpu.memory_space<vmem>>, vector<1x8x256xf32>
    tpu.vector_store %arg5[%c0_14, %c0_15, %c0_16], %33 {strides = array<i32>} : memref<1x8x256xf32, #tpu.memory_space<vmem>>, vector<1x8x256xf32>,
    return
  }
  func.func @transform_0(%arg0: i32) -> (i32, i32, i32) {
    %c0_i32 = arith.constant 0 : i32
    %c0_i32_0 = arith.constant 0 : i32
    %c0_i32_1 = arith.constant 0 : i32
    return %arg0, %c0_i32, %c0_i32_0 : i32, i32, i32
  }
  func.func @transform_1(%arg0: i32) -> (i32, i32) {
    %c0_i32 = arith.constant 0 : i32
    %c0_i32_0 = arith.constant 0 : i32
    %c0_i32_1 = arith.constant 0 : i32
    return %c0_i32, %c0_i32_0 : i32, i32
  }
  func.func @transform_2(%arg0: i32) -> (i32, i32) {
    %c0_i32 = arith.constant 0 : i32
    %c0_i32_0 = arith.constant 0 : i32
    %c0_i32_1 = arith.constant 0 : i32
    return %c0_i32, %c0_i32_0 : i32, i32
  }
  func.func @transform_3(%arg0: i32) -> (i32, i32) {
    %c0_i32 = arith.constant 0 : i32
    %c0_i32_0 = arith.constant 0 : i32
    %c0_i32_1 = arith.constant 0 : i32
    return %c0_i32, %c0_i32_0 : i32, i32
  }
  func.func @transform_4(%arg0: i32) -> (i32, i32, i32) {
    %c0_i32 = arith.constant 0 : i32
    %c0_i32_0 = arith.constant 0 : i32
    %c0_i32_1 = arith.constant 0 : i32
    return %arg0, %c0_i32, %c0_i32_0 : i32, i32, i32
  }
}

</mosaic_0001>

<llo_original>
// kernel: tpu_custom_call.1
$region0: #{tpu_custom_call.1}
  #allocation0 [shape = 'u32[]', space=smem, size = 0x4, offset = 0x4, fixed_abs, tag = 'smem constant byte address 0x4 - core index']
  #allocation1 [shape = 'u32[72,128]{1,0:T(1,128)}', space=vmem, size = 0x9000, scoped, tag = 'internal scratch']
  %s0 = inlined_call_operand.hbm [shape: f32[16,32,256], index: 0, kind: input, shape index: {}]
  %s1 = inlined_call_operand.hbm [shape: f32[256,256], index: 1, kind: input, shape index: {}]
  %s2 = inlined_call_operand.hbm [shape: f32[1,256], index: 2, kind: input, shape index: {}]
  %s3 = inlined_call_operand.vmem [shape: f32[1,128], index: 3, kind: input, shape index: {}]
  %s4 = inlined_call_operand.hbm [shape: f32[2,8,256], index: 4, kind: output, shape index: {}]
  %s5 = sld [smem:[#allocation0]]
  $region61: #{tpu_custom_call.1} parent=0
    _
  %s7 = ssub.s32 1, %s5
  %s8 = scalar_select 0, %s7, %s5
  $region1: #{tpu_custom_call.1} parent=0
    #allocation2 [shape = 'u8[524288]{0}', space=vmem, size = 0x80000, scoped, tag = 'input window, operand 0']
    #allocation3 [shape = 's32[2]{0}', space=sflag, size = 0x8, scoped, tag = 'scoped memory for tpu_custom_call.1']
    #allocation4 [shape = 's32[2]{0}', space=sflag, size = 0x8, scoped, tag = 'scoped memory for tpu_custom_call.1']
    #allocation5 [shape = 'u8[262144]{0}', space=vmem, size = 0x40000, scoped, tag = 'input window, operand 1, single buffered']
    #allocation6 [shape = 's32[1]{0}', space=sflag, size = 0x4, scoped, tag = 'scoped memory for tpu_custom_call.1']
    #allocation7 [shape = 'u8[1024]{0}', space=vmem, size = 0x400, scoped, tag = 'input window, operand 2, single buffered']
    #allocation8 [shape = 'u8[16384]{0}', space=vmem, size = 0x4000, scoped, tag = 'output window, operand 0']
    %9 = vsyncpa [#allocation3], 0
    %s10 = scalar_lea.sflag [#allocation3], 1
    %11 = vsyncpa %s10, 0
    %12 = vsyncpa [#allocation6], 0
    %13 = vsyncpa [#allocation4], 0
    %s14 = scalar_lea.sflag [#allocation4], 1
    %15 = vsyncpa %s14, 0
    loop: start=0, step=1, limit=4
    $region2: #{tpu_custom_call.1} parent=1 // loop_pre_header
      _
    $region3: #{tpu_custom_call.1} parent=1 // loop_header
      %s17 = sphi 0, %s21
      %p18 = scmp.ge.s32.totalorder %s17, 4
      %s27 = sphi 0, %s29
      %s30 = sphi 0, %s27
      %s31 = sphi 0, %s30
      %s47 = sphi 0, %s31
      %s51 = sphi 0, %s51
      %s53 = sphi 0, %s51
      %s54 = sphi 0, %s53
      %s68 = sphi 0, %s54
      %s72 = sphi 0, %s72
      %s74 = sphi 0, %s72
      %s75 = sphi 0, %s74
      %s89 = sphi 0, %s75
      %s93 = sphi 0, %s93
      %s95 = sphi 0, %s93
      %s96 = sphi 0, %s95
      %s110 = sphi 0, %s96
      %s116 = sphi 0, %s118
      %s119 = sphi 0, %s116
      %s120 = sphi 0, %s119
      %s136 = sphi 0, %s120
    $region4: #{tpu_custom_call.1} parent=1 // loop_header_branch
      %20 = sbr.rel (%p18) target = $region8
    $region5: #{tpu_custom_call.1} parent=1 // loop_body
      %s22 = ssub.s32 %s17, 1
      %s23 = ssub.s32 %s17, 2
      %s24 = sadd.s32 %s17, 1
      %s25 = ssub.s32 %s17, %s24
      %p26 = scmp.eq.s32.totalorder %s25, 0
      %s28 = sadd.s32 %s27, 1
      %s29 = scalar_select %p26, %s27, %s28
      %p32 = pneg %p26
      %p33 = scmp.eq.s32.totalorder %s17, 1
      %p34 = por %p32, %p33
      %p35 = scmp.ne.s32.totalorder %s27, %s30
      %p36 = scmp.eq.s32.totalorder %s17, 0
      %p37 = por %p35, %p36
      %p38 = scmp.ne.s32.totalorder %s27, %s30
      %p39 = scmp.eq.s32.totalorder %s22, 1
      %p40 = por %p38, %p39
      %p41 = scmp.ne.s32.totalorder %s30, %s31
      %p42 = scmp.eq.s32.totalorder %s22, 0
      %p43 = por %p41, %p42
      %p44 = scmp.ne.s32.totalorder %s30, %s31
      %p45 = scmp.eq.s32.totalorder %s23, 1
      %p46 = por %p44, %p45
      %p48 = scmp.ne.s32.totalorder %s31, %s47
      %p49 = scmp.eq.s32.totalorder %s23, 0
      %p50 = por %p48, %p49
      %s52 = sadd.s32 %s51, 1
      %p55 = scmp.eq.s32.totalorder %s17, 1
      %p56 = scmp.ne.s32.totalorder %s51, %s53
      %p57 = scmp.eq.s32.totalorder %s17, 0
      %p58 = por %p56, %p57
      %p59 = scmp.ne.s32.totalorder %s51, %s53
      %p60 = scmp.eq.s32.totalorder %s22, 1
      %p61 = por %p59, %p60
      %p62 = scmp.ne.s32.totalorder %s53, %s54
      %p63 = scmp.eq.s32.totalorder %s22, 0
      %p64 = por %p62, %p63
      %p65 = scmp.ne.s32.totalorder %s53, %s54
      %p66 = scmp.eq.s32.totalorder %s23, 1
      %p67 = por %p65, %p66
      %p69 = scmp.ne.s32.totalorder %s54, %s68
      %p70 = scmp.eq.s32.totalorder %s23, 0
      %p71 = por %p69, %p70
      %s73 = sadd.s32 %s72, 1
      %p76 = scmp.eq.s32.totalorder %s17, 1
      %p77 = scmp.ne.s32.totalorder %s72, %s74
      %p78 = scmp.eq.s32.totalorder %s17, 0
      %p79 = por %p77, %p78
      %p80 = scmp.ne.s32.totalorder %s72, %s74
      %p81 = scmp.eq.s32.totalorder %s22, 1
      %p82 = por %p80, %p81
      %p83 = scmp.ne.s32.totalorder %s74, %s75
      %p84 = scmp.eq.s32.totalorder %s22, 0
      %p85 = por %p83, %p84
      %p86 = scmp.ne.s32.totalorder %s74, %s75
      %p87 = scmp.eq.s32.totalorder %s23, 1
      %p88 = por %p86, %p87
      %p90 = scmp.ne.s32.totalorder %s75, %s89
      %p91 = scmp.eq.s32.totalorder %s23, 0
      %p92 = por %p90, %p91
      %s94 = sadd.s32 %s93, 1
      %p97 = scmp.eq.s32.totalorder %s17, 1
      %p98 = scmp.ne.s32.totalorder %s93, %s95
      %p99 = scmp.eq.s32.totalorder %s17, 0
      %p100 = por %p98, %p99
      %p101 = scmp.ne.s32.totalorder %s93, %s95
      %p102 = scmp.eq.s32.totalorder %s22, 1
      %p103 = por %p101, %p102
      %p104 = scmp.ne.s32.totalorder %s95, %s96
      %p105 = scmp.eq.s32.totalorder %s22, 0
      %p106 = por %p104, %p105
      %p107 = scmp.ne.s32.totalorder %s95, %s96
      %p108 = scmp.eq.s32.totalorder %s23, 1
      %p109 = por %p107, %p108
      %p111 = scmp.ne.s32.totalorder %s96, %s110
      %p112 = scmp.eq.s32.totalorder %s23, 0
      %p113 = por %p111, %p112
      %s114 = ssub.s32 %s17, %s24
      %p115 = scmp.eq.s32.totalorder %s114, 0
      %s117 = sadd.s32 %s116, 1
      %s118 = scalar_select %p115, %s116, %s117
      %p121 = pneg %p115
      %p122 = scmp.eq.s32.totalorder %s17, 1
      %p123 = por %p121, %p122
      %p124 = scmp.ne.s32.totalorder %s116, %s119
      %p125 = scmp.eq.s32.totalorder %s17, 0
      %p126 = por %p124, %p125
      %p127 = scmp.ne.s32.totalorder %s116, %s119
      %p128 = scmp.eq.s32.totalorder %s22, 1
      %p129 = por %p127, %p128
      %p130 = scmp.ne.s32.totalorder %s119, %s120
      %p131 = scmp.eq.s32.totalorder %s22, 0
      %p132 = por %p130, %p131
      %p133 = scmp.ne.s32.totalorder %s119, %s120
      %p134 = scmp.eq.s32.totalorder %s23, 1
      %p135 = por %p133, %p134
      %p137 = scmp.ne.s32.totalorder %s120, %s136
      %p138 = scmp.eq.s32.totalorder %s23, 0
      %p139 = por %p137, %p138
      %p140 = scmp.le.s32.totalorder 1, %s17
      %p141 = scmp.lt.s32.totalorder %s17, 3
      %p142 = pnand %p140, %p141
      %p143 = pneg %p142
      // Predicated region
      $region9: #{tpu_custom_call.1} parent=5 // pred_check
        _
      $region10: #{tpu_custom_call.1} parent=5 // pred_check_branch
        %145 = sbr.rel (%p142) target = $region12
      $region11: #{tpu_custom_call.1} parent=5 // pred_region
        %s146 = ssub.s32 %s17, 1
        // Predicated region
        $region13: #{tpu_custom_call.1} parent=11 // pred_check
          %p147 = pneg %p64
        $region14: #{tpu_custom_call.1} parent=11 // pred_check_branch
          %149 = sbr.rel (%p147) target = $region16
        $region15: #{tpu_custom_call.1} parent=11 // pred_region
          %151 = vsyncadd [#allocation6], 0
          %s152 = sshll.u32 %s1, 4
          %s153 = int_to_ptr.hbm [resolvable:$true] %s152
          %s154 = sshll.u32 [#allocation5], 4
          %s155 = int_to_ptr.vmem [resolvable:$true] %s154
          %160 = dma.hbm_to_vmem [thread:$0]  %s153, 8192, %s155, [#allocation6], 256, 256, 16
        $region16: #{tpu_custom_call.1} parent=11 // pred_fallthru
          _
        // Predicated region
        $region17: #{tpu_custom_call.1} parent=11 // pred_check
          %p161 = pneg %p85
        $region18: #{tpu_custom_call.1} parent=11 // pred_check_branch
          %163 = sbr.rel (%p161) target = $region20
        $region19: #{tpu_custom_call.1} parent=11 // pred_region
          %165 = vsyncadd [#allocation6], 0
          %s167 = sshll.u32 %s2, 4
          %s168 = int_to_ptr.hbm [resolvable:$true] %s167
          %s169 = sshll.u32 [#allocation7], 4
          %s170 = int_to_ptr.vmem [resolvable:$true] %s169
          %172 = dma.hbm_to_vmem [thread:$0]  %s168, 32, %s170, [#allocation6]
        $region20: #{tpu_custom_call.1} parent=11 // pred_fallthru
          _
        // Predicated region
        $region21: #{tpu_custom_call.1} parent=11 // pred_check
          %p173 = pneg %p106
        $region22: #{tpu_custom_call.1} parent=11 // pred_check_branch
          %175 = sbr.rel (%p173) target = $region24
        $region23: #{tpu_custom_call.1} parent=11 // pred_region
          _
        $region24: #{tpu_custom_call.1} parent=11 // pred_fallthru
          _
      $region12: #{tpu_custom_call.1} parent=5 // pred_fallthru
        _
      %p176 = scmp.lt.s32.totalorder %s17, 2
      // Predicated region
      $region25: #{tpu_custom_call.1} parent=5 // pred_check
        %p177 = pneg %p176
      $region26: #{tpu_custom_call.1} parent=5 // pred_check_branch
        %179 = sbr.rel (%p177) target = $region28
      $region27: #{tpu_custom_call.1} parent=5 // pred_region
        // Predicated region
        $region29: #{tpu_custom_call.1} parent=27 // pred_check
          %p180 = pneg %p37
        $region30: #{tpu_custom_call.1} parent=27 // pred_check_branch
          %182 = sbr.rel (%p180) target = $region32
        $region31: #{tpu_custom_call.1} parent=27 // pred_region
          %s183 = sand.u32 %s27, 1
          %s184 = scalar_lea.sflag [#allocation3], %s183
          %s185 = sand.u32 %s27, 1
          %s186 = smul.addr %s185, 512
          %s187 = scalar_lea.vmem [#allocation2], %s186
          %s188 = smul.u32 8, %s17
          %190 = vsyncadd %s184, 0
          %s191 = smul.addr %s188, 8
          %s192 = smul.addr %s191, 8
          %s193 = scalar_lea.hbm %s0, %s192
          %s194 = sshll.u32 %s193, 4
          %s195 = int_to_ptr.hbm [resolvable:$true] %s194
          %s196 = sshll.u32 %s187, 4
          %s197 = int_to_ptr.vmem [resolvable:$true] %s196
          %202 = dma.hbm_to_vmem [thread:$0]  %s195, 8192, %s197, %s184, 256, 256, 16
        $region32: #{tpu_custom_call.1} parent=27 // pred_fallthru
          _
      $region28: #{tpu_custom_call.1} parent=5 // pred_fallthru
        _
      %p203 = scmp.le.s32.totalorder 1, %s17
      %p204 = scmp.lt.s32.totalorder %s17, 3
      %p205 = pnand %p203, %p204
      %p206 = pneg %p205
      // Predicated region
      $region33: #{tpu_custom_call.1} parent=5 // pred_check
        _
      $region34: #{tpu_custom_call.1} parent=5 // pred_check_branch
        %208 = sbr.rel (%p205) target = $region36
      $region35: #{tpu_custom_call.1} parent=5 // pred_region
        %s209 = ssub.s32 %s17, 1
        %s210 = sand.u32 %s30, 1
        %s211 = scalar_lea.sflag [#allocation3], %s210
        %s212 = sand.u32 %s30, 1
        %s213 = smul.addr %s212, 512
        %s214 = scalar_lea.vmem [#allocation2], %s213
        // Predicated region
        $region37: #{tpu_custom_call.1} parent=35 // pred_check
          %p215 = pneg %p43
        $region38: #{tpu_custom_call.1} parent=35 // pred_check_branch
          %217 = sbr.rel (%p215) target = $region40
        $region39: #{tpu_custom_call.1} parent=35 // pred_region
          %219 = dma.done %s211, 8192
        $region40: #{tpu_custom_call.1} parent=35 // pred_fallthru
          _
        // Predicated region
        $region41: #{tpu_custom_call.1} parent=35 // pred_check
          %p220 = pneg %p64
        $region42: #{tpu_custom_call.1} parent=35 // pred_check_branch
          %222 = sbr.rel (%p220) target = $region44
        $region43: #{tpu_custom_call.1} parent=35 // pred_region
          %224 = dma.done [#allocation6], 8192
        $region44: #{tpu_custom_call.1} parent=35 // pred_fallthru
          _
        // Predicated region
        $region45: #{tpu_custom_call.1} parent=35 // pred_check
          %p225 = pneg %p85
        $region46: #{tpu_custom_call.1} parent=35 // pred_check_branch
          %227 = sbr.rel (%p225) target = $region48
        $region47: #{tpu_custom_call.1} parent=35 // pred_region
          %229 = dma.done [#allocation6], 32
        $region48: #{tpu_custom_call.1} parent=35 // pred_fallthru
          _
        %s230 = sand.u32 %s30, 1
        %s231 = scalar_lea.sflag [#allocation3], %s230
        %s232 = sand.u32 %s30, 1
        %s233 = smul.addr %s232, 512
        %s234 = scalar_lea.vmem [#allocation2], %s233
        %p235 = pneg %p43
        %p236 = pneg %p40
        %p237 = pneg %p64
        %p238 = pneg %p61
        %p239 = pneg %p85
        %p240 = pneg %p82
        %p241 = pneg %p106
        %p242 = pneg %p103
        %p243 = pneg %p132
        %p244 = pneg %p129
        %s245 = sand.u32 %s119, 1
        %s246 = scalar_lea.sflag [#allocation4], %s245
        %s247 = sand.u32 %s119, 1
        %s248 = smul.addr %s247, 16
        %s249 = scalar_lea.vmem [#allocation8], %s248
        %s250 = smul.u32 8, %s22
        %v251 = vld [vmem:[%s214] sm:$0xff]
        %v252 = vld [vmem:[%s214 + $0x8] sm:$0xff]
        %v253 = vld [vmem:[%s214 + $0x10] sm:$0xff]
        %v254 = vld [vmem:[%s214 + $0x18] sm:$0xff]
        %v255 = vld [vmem:[%s214 + $0x20] sm:$0xff]
        %v256 = vld [vmem:[%s214 + $0x28] sm:$0xff]
        %v257 = vld [vmem:[%s214 + $0x30] sm:$0xff]
        %v258 = vld [vmem:[%s214 + $0x38] sm:$0xff]
        %v259 = vld [vmem:[%s214 + $0x40] sm:$0xff]
        %v260 = vld [vmem:[%s214 + $0x48] sm:$0xff]
        %v261 = vld [vmem:[%s214 + $0x50] sm:$0xff]
        %v262 = vld [vmem:[%s214 + $0x58] sm:$0xff]
        %v263 = vld [vmem:[%s214 + $0x60] sm:$0xff]
        %v264 = vld [vmem:[%s214 + $0x68] sm:$0xff]
        %v265 = vld [vmem:[%s214 + $0x70] sm:$0xff]
        %v266 = vld [vmem:[%s214 + $0x78] sm:$0xff]
        %v267 = vld [vmem:[%s214 + $0x80] sm:$0xff]
        %v268 = vld [vmem:[%s214 + $0x88] sm:$0xff]
        %v269 = vld [vmem:[%s214 + $0x90] sm:$0xff]
        %v270 = vld [vmem:[%s214 + $0x98] sm:$0xff]
        %v271 = vld [vmem:[%s214 + $0xa0] sm:$0xff]
        %v272 = vld [vmem:[%s214 + $0xa8] sm:$0xff]
        %v273 = vld [vmem:[%s214 + $0xb0] sm:$0xff]
        %v274 = vld [vmem:[%s214 + $0xb8] sm:$0xff]
        %v275 = vld [vmem:[%s214 + $0xc0] sm:$0xff]
        %v276 = vld [vmem:[%s214 + $0xc8] sm:$0xff]
        %v277 = vld [vmem:[%s214 + $0xd0] sm:$0xff]
        %v278 = vld [vmem:[%s214 + $0xd8] sm:$0xff]
        %v279 = vld [vmem:[%s214 + $0xe0] sm:$0xff]
        %v280 = vld [vmem:[%s214 + $0xe8] sm:$0xff]
        %v281 = vld [vmem:[%s214 + $0xf0] sm:$0xff]
        %v282 = vld [vmem:[%s214 + $0xf8] sm:$0xff]
        %v283 = vld [vmem:[%s214 + $0x100] sm:$0xff]
        %v284 = vld [vmem:[%s214 + $0x108] sm:$0xff]
        %v285 = vld [vmem:[%s214 + $0x110] sm:$0xff]
        %v286 = vld [vmem:[%s214 + $0x118] sm:$0xff]
        %v287 = vld [vmem:[%s214 + $0x120] sm:$0xff]
        %v288 = vld [vmem:[%s214 + $0x128] sm:$0xff]
        %v289 = vld [vmem:[%s214 + $0x130] sm:$0xff]
        %v290 = vld [vmem:[%s214 + $0x138] sm:$0xff]
        %v291 = vld [vmem:[%s214 + $0x140] sm:$0xff]
        %v292 = vld [vmem:[%s214 + $0x148] sm:$0xff]
        %v293 = vld [vmem:[%s214 + $0x150] sm:$0xff]
        %v294 = vld [vmem:[%s214 + $0x158] sm:$0xff]
        %v295 = vld [vmem:[%s214 + $0x160] sm:$0xff]
        %v296 = vld [vmem:[%s214 + $0x168] sm:$0xff]
        %v297 = vld [vmem:[%s214 + $0x170] sm:$0xff]
        %v298 = vld [vmem:[%s214 + $0x178] sm:$0xff]
        %v299 = vld [vmem:[%s214 + $0x180] sm:$0xff]
        %v300 = vld [vmem:[%s214 + $0x188] sm:$0xff]
        %v301 = vld [vmem:[%s214 + $0x190] sm:$0xff]
        %v302 = vld [vmem:[%s214 + $0x198] sm:$0xff]
        %v303 = vld [vmem:[%s214 + $0x1a0] sm:$0xff]
        %v304 = vld [vmem:[%s214 + $0x1a8] sm:$0xff]
        %v305 = vld [vmem:[%s214 + $0x1b0] sm:$0xff]
        %v306 = vld [vmem:[%s214 + $0x1b8] sm:$0xff]
        %v307 = vld [vmem:[%s214 + $0x1c0] sm:$0xff]
        %v308 = vld [vmem:[%s214 + $0x1c8] sm:$0xff]
        %v309 = vld [vmem:[%s214 + $0x1d0] sm:$0xff]
        %v310 = vld [vmem:[%s214 + $0x1d8] sm:$0xff]
        %v311 = vld [vmem:[%s214 + $0x1e0] sm:$0xff]
        %v312 = vld [vmem:[%s214 + $0x1e8] sm:$0xff]
        %v313 = vld [vmem:[%s214 + $0x1f0] sm:$0xff]
        %v314 = vld [vmem:[%s214 + $0x1f8] sm:$0xff]
        %v315 = vld [vmem:[#allocation5] sm:$0xff]
        %v316 = vld [vmem:[#allocation5 + $0x8] sm:$0xff]
        %v317 = vld [vmem:[#allocation5 + $0x10] sm:$0xff]
        %v318 = vld [vmem:[#allocation5 + $0x18] sm:$0xff]
        %v319 = vld [vmem:[#allocation5 + $0x20] sm:$0xff]
        %v320 = vld [vmem:[#allocation5 + $0x28] sm:$0xff]
        %v321 = vld [vmem:[#allocation5 + $0x30] sm:$0xff]
        %v322 = vld [vmem:[#allocation5 + $0x38] sm:$0xff]
        %v323 = vld [vmem:[#allocation5 + $0x40] sm:$0xff]
        %v324 = vld [vmem:[#allocation5 + $0x48] sm:$0xff]
        %v325 = vld [vmem:[#allocation5 + $0x50] sm:$0xff]
        %v326 = vld [vmem:[#allocation5 + $0x58] sm:$0xff]
        %v327 = vld [vmem:[#allocation5 + $0x60] sm:$0xff]
        %v328 = vld [vmem:[#allocation5 + $0x68] sm:$0xff]
        %v329 = vld [vmem:[#allocation5 + $0x70] sm:$0xff]
        %v330 = vld [vmem:[#allocation5 + $0x78] sm:$0xff]
        %v331 = vld [vmem:[#allocation5 + $0x80] sm:$0xff]
        %v332 = vld [vmem:[#allocation5 + $0x88] sm:$0xff]
        %v333 = vld [vmem:[#allocation5 + $0x90] sm:$0xff]
        %v334 = vld [vmem:[#allocation5 + $0x98] sm:$0xff]
        %v335 = vld [vmem:[#allocation5 + $0xa0] sm:$0xff]
        %v336 = vld [vmem:[#allocation5 + $0xa8] sm:$0xff]
        %v337 = vld [vmem:[#allocation5 + $0xb0] sm:$0xff]
        %v338 = vld [vmem:[#allocation5 + $0xb8] sm:$0xff]
        %v339 = vld [vmem:[#allocation5 + $0xc0] sm:$0xff]
        %v340 = vld [vmem:[#allocation5 + $0xc8] sm:$0xff]
        %v341 = vld [vmem:[#allocation5 + $0xd0] sm:$0xff]
        %v342 = vld [vmem:[#allocation5 + $0xd8] sm:$0xff]
        %v343 = vld [vmem:[#allocation5 + $0xe0] sm:$0xff]
        %v344 = vld [vmem:[#allocation5 + $0xe8] sm:$0xff]
        %v345 = vld [vmem:[#allocation5 + $0xf0] sm:$0xff]
        %v346 = vld [vmem:[#allocation5 + $0xf8] sm:$0xff]
        %v347 = vld [vmem:[#allocation5 + $0x100] sm:$0xff]
        %v348 = vld [vmem:[#allocation5 + $0x108] sm:$0xff]
        %v349 = vld [vmem:[#allocation5 + $0x110] sm:$0xff]
        %v350 = vld [vmem:[#allocation5 + $0x118] sm:$0xff]
        %v351 = vld [vmem:[#allocation5 + $0x120] sm:$0xff]
        %v352 = vld [vmem:[#allocation5 + $0x128] sm:$0xff]
        %v353 = vld [vmem:[#allocation5 + $0x130] sm:$0xff]
        %v354 = vld [vmem:[#allocation5 + $0x138] sm:$0xff]
        %v355 = vld [vmem:[#allocation5 + $0x140] sm:$0xff]
        %v356 = vld [vmem:[#allocation5 + $0x148] sm:$0xff]
        %v357 = vld [vmem:[#allocation5 + $0x150] sm:$0xff]
        %v358 = vld [vmem:[#allocation5 + $0x158] sm:$0xff]
        %v359 = vld [vmem:[#allocation5 + $0x160] sm:$0xff]
        %v360 = vld [vmem:[#allocation5 + $0x168] sm:$0xff]
        %v361 = vld [vmem:[#allocation5 + $0x170] sm:$0xff]
        %v362 = vld [vmem:[#allocation5 + $0x178] sm:$0xff]
        %v363 = vld [vmem:[#allocation5 + $0x180] sm:$0xff]
        %v364 = vld [vmem:[#allocation5 + $0x188] sm:$0xff]
        %v365 = vld [vmem:[#allocation5 + $0x190] sm:$0xff]
        %v366 = vld [vmem:[#allocation5 + $0x198] sm:$0xff]
        %v367 = vld [vmem:[#allocation5 + $0x1a0] sm:$0xff]
        %v368 = vld [vmem:[#allocation5 + $0x1a8] sm:$0xff]
        %v369 = vld [vmem:[#allocation5 + $0x1b0] sm:$0xff]
        %v370 = vld [vmem:[#allocation5 + $0x1b8] sm:$0xff]
        %v371 = vld [vmem:[#allocation5 + $0x1c0] sm:$0xff]
        %v372 = vld [vmem:[#allocation5 + $0x1c8] sm:$0xff]
        %v373 = vld [vmem:[#allocation5 + $0x1d0] sm:$0xff]
        %v374 = vld [vmem:[#allocation5 + $0x1d8] sm:$0xff]
        %v375 = vld [vmem:[#allocation5 + $0x1e0] sm:$0xff]
        %v376 = vld [vmem:[#allocation5 + $0x1e8] sm:$0xff]
        %v377 = vld [vmem:[#allocation5 + $0x1f0] sm:$0xff]
        %v378 = vld [vmem:[#allocation5 + $0x1f8] sm:$0xff]
        %v379 = vld [vmem:[#allocation7] sm:$0x3]
        %v381 = vperm.slane %v379, 0
        %v382 = vperm.slane %v379, 1
        %385 = vmatpush.msra.mxu0 %v345
        %386 = vmatpush.msra.mxu0 %v343
        %387 = vmatpush.msra.mxu0 %v341
        %388 = vmatpush.msra.mxu0 %v339
        %389 = vmatpush.msra.mxu0 %v337
        %390 = vmatpush.msra.mxu0 %v335
        %391 = vmatpush.msra.mxu0 %v333
        %392 = vmatpush.msra.mxu0 %v331
        %393 = vmatpush.msra.mxu0 %v329
        %394 = vmatpush.msra.mxu0 %v327
        %395 = vmatpush.msra.mxu0 %v325
        %396 = vmatpush.msra.mxu0 %v323
        %397 = vmatpush.msra.mxu0 %v321
        %398 = vmatpush.msra.mxu0 %v319
        %399 = vmatpush.msra.mxu0 %v317
        %400 = vmatpush.msra.mxu0 %v315
        %401 = vmatmul.f32.gmra.mxu0 %v251
        %v402 = vpop.f32.mrf.mxu0
        %v403 = vadd.f32 %v381, %v402
        %404 = vmatmul.f32.gmra.mxu0 %v253
        %v405 = vpop.f32.mrf.mxu0
        %v406 = vadd.f32 %v381, %v405
        %407 = vmatmul.f32.gmra.mxu0 %v255
        %v408 = vpop.f32.mrf.mxu0
        %v409 = vadd.f32 %v381, %v408
        %410 = vmatmul.f32.gmra.mxu0 %v257
        %v411 = vpop.f32.mrf.mxu0
        %v412 = vadd.f32 %v381, %v411
        %413 = vmatmul.f32.gmra.mxu0 %v259
        %v414 = vpop.f32.mrf.mxu0
        %v415 = vadd.f32 %v381, %v414
        %416 = vmatmul.f32.gmra.mxu0 %v261
        %v417 = vpop.f32.mrf.mxu0
        %v418 = vadd.f32 %v381, %v417
        %419 = vmatmul.f32.gmra.mxu0 %v263
        %v420 = vpop.f32.mrf.mxu0
        %v421 = vadd.f32 %v381, %v420
        %422 = vmatmul.f32.gmra.mxu0 %v265
        %v423 = vpop.f32.mrf.mxu0
        %v424 = vadd.f32 %v381, %v423
        %425 = vmatmul.f32.gmra.mxu0 %v267
        %v426 = vpop.f32.mrf.mxu0
        %v427 = vadd.f32 %v381, %v426
        %428 = vmatmul.f32.gmra.mxu0 %v269
        %v429 = vpop.f32.mrf.mxu0
        %v430 = vadd.f32 %v381, %v429
        %431 = vmatmul.f32.gmra.mxu0 %v271
        %v432 = vpop.f32.mrf.mxu0
        %v433 = vadd.f32 %v381, %v432
        %434 = vmatmul.f32.gmra.mxu0 %v273
        %v435 = vpop.f32.mrf.mxu0
        %v436 = vadd.f32 %v381, %v435
        %437 = vmatmul.f32.gmra.mxu0 %v275
        %v438 = vpop.f32.mrf.mxu0
        %v439 = vadd.f32 %v381, %v438
        %440 = vmatmul.f32.gmra.mxu0 %v277
        %v441 = vpop.f32.mrf.mxu0
        %v442 = vadd.f32 %v381, %v441
        %443 = vmatmul.f32.gmra.mxu0 %v279
        %v444 = vpop.f32.mrf.mxu0
        %v445 = vadd.f32 %v381, %v444
        %446 = vmatmul.f32.gmra.mxu0 %v281
        %v447 = vpop.f32.mrf.mxu0
        %v448 = vadd.f32 %v381, %v447
        %449 = vmatmul.f32.gmra.mxu0 %v283
        %v450 = vpop.f32.mrf.mxu0
        %v451 = vadd.f32 %v381, %v450
        %452 = vmatmul.f32.gmra.mxu0 %v285
        %v453 = vpop.f32.mrf.mxu0
        %v454 = vadd.f32 %v381, %v453
        %455 = vmatmul.f32.gmra.mxu0 %v287
        %v456 = vpop.f32.mrf.mxu0
        %v457 = vadd.f32 %v381, %v456
        %458 = vmatmul.f32.gmra.mxu0 %v289
        %v459 = vpop.f32.mrf.mxu0
        %v460 = vadd.f32 %v381, %v459
        %461 = vmatmul.f32.gmra.mxu0 %v291
        %v462 = vpop.f32.mrf.mxu0
        %v463 = vadd.f32 %v381, %v462
        %464 = vmatmul.f32.gmra.mxu0 %v293
        %v465 = vpop.f32.mrf.mxu0
        %v466 = vadd.f32 %v381, %v465
        %467 = vmatmul.f32.gmra.mxu0 %v295
        %v468 = vpop.f32.mrf.mxu0
        %v469 = vadd.f32 %v381, %v468
        %470 = vmatmul.f32.gmra.mxu0 %v297
        %v471 = vpop.f32.mrf.mxu0
        %v472 = vadd.f32 %v381, %v471
        %473 = vmatmul.f32.gmra.mxu0 %v299
        %v474 = vpop.f32.mrf.mxu0
        %v475 = vadd.f32 %v381, %v474
        %476 = vmatmul.f32.gmra.mxu0 %v301
        %v477 = vpop.f32.mrf.mxu0
        %v478 = vadd.f32 %v381, %v477
        %479 = vmatmul.f32.gmra.mxu0 %v303
        %v480 = vpop.f32.mrf.mxu0
        %v481 = vadd.f32 %v381, %v480
        %482 = vmatmul.f32.gmra.mxu0 %v305
        %v483 = vpop.f32.mrf.mxu0
        %v484 = vadd.f32 %v381, %v483
        %485 = vmatmul.f32.gmra.mxu0 %v307
        %v486 = vpop.f32.mrf.mxu0
        %v487 = vadd.f32 %v381, %v486
        %488 = vmatmul.f32.gmra.mxu0 %v309
        %v489 = vpop.f32.mrf.mxu0
        %v490 = vadd.f32 %v381, %v489
        %491 = vmatmul.f32.gmra.mxu0 %v311
        %v492 = vpop.f32.mrf.mxu0
        %v493 = vadd.f32 %v381, %v492
        %494 = vmatmul.f32.gmra.mxu0 %v313
        %v495 = vpop.f32.mrf.mxu0
        %v496 = vadd.f32 %v381, %v495
        %497 = vdwg.mxu0
        %498 = vmatpush.msra.mxu0 %v377
        %499 = vmatpush.msra.mxu0 %v375
        %500 = vmatpush.msra.mxu0 %v373
        %501 = vmatpush.msra.mxu0 %v371
        %502 = vmatpush.msra.mxu0 %v369
        %503 = vmatpush.msra.mxu0 %v367
        %504 = vmatpush.msra.mxu0 %v365
        %505 = vmatpush.msra.mxu0 %v363
        %506 = vmatpush.msra.mxu0 %v361
        %507 = vmatpush.msra.mxu0 %v359
        %508 = vmatpush.msra.mxu0 %v357
        %509 = vmatpush.msra.mxu0 %v355
        %510 = vmatpush.msra.mxu0 %v353
        %511 = vmatpush.msra.mxu0 %v351
        %512 = vmatpush.msra.mxu0 %v349
        %513 = vmatpush.msra.mxu0 %v347
        %514 = vmatmul.f32.gmra.mxu0 %v252
        %v515 = vpop.f32.mrf.mxu0
        %v516 = vadd.f32 %v403, %v515
        %517 = vmatmul.f32.gmra.mxu0 %v254
        %v518 = vpop.f32.mrf.mxu0
        %v519 = vadd.f32 %v406, %v518
        %520 = vmatmul.f32.gmra.mxu0 %v256
        %v521 = vpop.f32.mrf.mxu0
        %v522 = vadd.f32 %v409, %v521
        %523 = vmatmul.f32.gmra.mxu0 %v258
        %v524 = vpop.f32.mrf.mxu0
        %v525 = vadd.f32 %v412, %v524
        %526 = vmatmul.f32.gmra.mxu0 %v260
        %v527 = vpop.f32.mrf.mxu0
        %v528 = vadd.f32 %v415, %v527
        %529 = vmatmul.f32.gmra.mxu0 %v262
        %v530 = vpop.f32.mrf.mxu0
        %v531 = vadd.f32 %v418, %v530
        %532 = vmatmul.f32.gmra.mxu0 %v264
        %v533 = vpop.f32.mrf.mxu0
        %v534 = vadd.f32 %v421, %v533
        %535 = vmatmul.f32.gmra.mxu0 %v266
        %v536 = vpop.f32.mrf.mxu0
        %v537 = vadd.f32 %v424, %v536
        %538 = vmatmul.f32.gmra.mxu0 %v268
        %v539 = vpop.f32.mrf.mxu0
        %v540 = vadd.f32 %v427, %v539
        %541 = vmatmul.f32.gmra.mxu0 %v270
        %v542 = vpop.f32.mrf.mxu0
        %v543 = vadd.f32 %v430, %v542
        %544 = vmatmul.f32.gmra.mxu0 %v272
        %v545 = vpop.f32.mrf.mxu0
        %v546 = vadd.f32 %v433, %v545
        %547 = vmatmul.f32.gmra.mxu0 %v274
        %v548 = vpop.f32.mrf.mxu0
        %v549 = vadd.f32 %v436, %v548
        %550 = vmatmul.f32.gmra.mxu0 %v276
        %v551 = vpop.f32.mrf.mxu0
        %v552 = vadd.f32 %v439, %v551
        %553 = vmatmul.f32.gmra.mxu0 %v278
        %v554 = vpop.f32.mrf.mxu0
        %v555 = vadd.f32 %v442, %v554
        %556 = vmatmul.f32.gmra.mxu0 %v280
        %v557 = vpop.f32.mrf.mxu0
        %v558 = vadd.f32 %v445, %v557
        %559 = vmatmul.f32.gmra.mxu0 %v282
        %v560 = vpop.f32.mrf.mxu0
        %v561 = vadd.f32 %v448, %v560
        %562 = vmatmul.f32.gmra.mxu0 %v284
        %v563 = vpop.f32.mrf.mxu0
        %v564 = vadd.f32 %v451, %v563
        %565 = vmatmul.f32.gmra.mxu0 %v286
        %v566 = vpop.f32.mrf.mxu0
        %v567 = vadd.f32 %v454, %v566
        %568 = vmatmul.f32.gmra.mxu0 %v288
        %v569 = vpop.f32.mrf.mxu0
        %v570 = vadd.f32 %v457, %v569
        %571 = vmatmul.f32.gmra.mxu0 %v290
        %v572 = vpop.f32.mrf.mxu0
        %v573 = vadd.f32 %v460, %v572
        %574 = vmatmul.f32.gmra.mxu0 %v292
        %v575 = vpop.f32.mrf.mxu0
        %v576 = vadd.f32 %v463, %v575
        %577 = vmatmul.f32.gmra.mxu0 %v294
        %v578 = vpop.f32.mrf.mxu0
        %v579 = vadd.f32 %v466, %v578
        %580 = vmatmul.f32.gmra.mxu0 %v296
        %v581 = vpop.f32.mrf.mxu0
        %v582 = vadd.f32 %v469, %v581
        %583 = vmatmul.f32.gmra.mxu0 %v298
        %v584 = vpop.f32.mrf.mxu0
        %v585 = vadd.f32 %v472, %v584
        %586 = vmatmul.f32.gmra.mxu0 %v300
        %v587 = vpop.f32.mrf.mxu0
        %v588 = vadd.f32 %v475, %v587
        %589 = vmatmul.f32.gmra.mxu0 %v302
        %v590 = vpop.f32.mrf.mxu0
        %v591 = vadd.f32 %v478, %v590
        %592 = vmatmul.f32.gmra.mxu0 %v304
        %v593 = vpop.f32.mrf.mxu0
        %v594 = vadd.f32 %v481, %v593
        %595 = vmatmul.f32.gmra.mxu0 %v306
        %v596 = vpop.f32.mrf.mxu0
        %v597 = vadd.f32 %v484, %v596
        %598 = vmatmul.f32.gmra.mxu0 %v308
        %v599 = vpop.f32.mrf.mxu0
        %v600 = vadd.f32 %v487, %v599
        %601 = vmatmul.f32.gmra.mxu0 %v310
        %v602 = vpop.f32.mrf.mxu0
        %v603 = vadd.f32 %v490, %v602
        %604 = vmatmul.f32.gmra.mxu0 %v312
        %v605 = vpop.f32.mrf.mxu0
        %v606 = vadd.f32 %v493, %v605
        %607 = vmatmul.f32.gmra.mxu0 %v314
        %v608 = vpop.f32.mrf.mxu0
        %v609 = vadd.f32 %v496, %v608
        %610 = vdwg.mxu0
        %611 = vmatpush.msra.mxu0 %v346
        %612 = vmatpush.msra.mxu0 %v344
        %613 = vmatpush.msra.mxu0 %v342
        %614 = vmatpush.msra.mxu0 %v340
        %615 = vmatpush.msra.mxu0 %v338
        %616 = vmatpush.msra.mxu0 %v336
        %617 = vmatpush.msra.mxu0 %v334
        %618 = vmatpush.msra.mxu0 %v332
        %619 = vmatpush.msra.mxu0 %v330
        %620 = vmatpush.msra.mxu0 %v328
        %621 = vmatpush.msra.mxu0 %v326
        %622 = vmatpush.msra.mxu0 %v324
        %623 = vmatpush.msra.mxu0 %v322
        %624 = vmatpush.msra.mxu0 %v320
        %625 = vmatpush.msra.mxu0 %v318
        %626 = vmatpush.msra.mxu0 %v316
        %627 = vmatmul.f32.gmra.mxu0 %v251
        %v628 = vpop.f32.mrf.mxu0
        %v629 = vadd.f32 %v382, %v628
        %630 = vmatmul.f32.gmra.mxu0 %v253
        %v631 = vpop.f32.mrf.mxu0
        %v632 = vadd.f32 %v382, %v631
        %633 = vmatmul.f32.gmra.mxu0 %v255
        %v634 = vpop.f32.mrf.mxu0
        %v635 = vadd.f32 %v382, %v634
        %636 = vmatmul.f32.gmra.mxu0 %v257
        %v637 = vpop.f32.mrf.mxu0
        %v638 = vadd.f32 %v382, %v637
        %639 = vmatmul.f32.gmra.mxu0 %v259
        %v640 = vpop.f32.mrf.mxu0
        %v641 = vadd.f32 %v382, %v640
        %642 = vmatmul.f32.gmra.mxu0 %v261
        %v643 = vpop.f32.mrf.mxu0
        %v644 = vadd.f32 %v382, %v643
        %645 = vmatmul.f32.gmra.mxu0 %v263
        %v646 = vpop.f32.mrf.mxu0
        %v647 = vadd.f32 %v382, %v646
        %648 = vmatmul.f32.gmra.mxu0 %v265
        %v649 = vpop.f32.mrf.mxu0
        %v650 = vadd.f32 %v382, %v649
        %651 = vmatmul.f32.gmra.mxu0 %v267
        %v652 = vpop.f32.mrf.mxu0
        %v653 = vadd.f32 %v382, %v652
        %654 = vmatmul.f32.gmra.mxu0 %v269
        %v655 = vpop.f32.mrf.mxu0
        %v656 = vadd.f32 %v382, %v655
        %657 = vmatmul.f32.gmra.mxu0 %v271
        %v658 = vpop.f32.mrf.mxu0
        %v659 = vadd.f32 %v382, %v658
        %660 = vmatmul.f32.gmra.mxu0 %v273
        %v661 = vpop.f32.mrf.mxu0
        %v662 = vadd.f32 %v382, %v661
        %663 = vmatmul.f32.gmra.mxu0 %v275
        %v664 = vpop.f32.mrf.mxu0
        %v665 = vadd.f32 %v382, %v664
        %666 = vmatmul.f32.gmra.mxu0 %v277
        %v667 = vpop.f32.mrf.mxu0
        %v668 = vadd.f32 %v382, %v667
        %669 = vmatmul.f32.gmra.mxu0 %v279
        %v670 = vpop.f32.mrf.mxu0
        %v671 = vadd.f32 %v382, %v670
        %672 = vmatmul.f32.gmra.mxu0 %v281
        %v673 = vpop.f32.mrf.mxu0
        %v674 = vadd.f32 %v382, %v673
        %675 = vmatmul.f32.gmra.mxu0 %v283
        %v676 = vpop.f32.mrf.mxu0
        %v677 = vadd.f32 %v382, %v676
        %678 = vmatmul.f32.gmra.mxu0 %v285
        %v679 = vpop.f32.mrf.mxu0
        %v680 = vadd.f32 %v382, %v679
        %681 = vmatmul.f32.gmra.mxu0 %v287
        %v682 = vpop.f32.mrf.mxu0
        %v683 = vadd.f32 %v382, %v682
        %684 = vmatmul.f32.gmra.mxu0 %v289
        %v685 = vpop.f32.mrf.mxu0
        %v686 = vadd.f32 %v382, %v685
        %687 = vmatmul.f32.gmra.mxu0 %v291
        %v688 = vpop.f32.mrf.mxu0
        %v689 = vadd.f32 %v382, %v688
        %690 = vmatmul.f32.gmra.mxu0 %v293
        %v691 = vpop.f32.mrf.mxu0
        %v692 = vadd.f32 %v382, %v691
        %693 = vmatmul.f32.gmra.mxu0 %v295
        %v694 = vpop.f32.mrf.mxu0
        %v695 = vadd.f32 %v382, %v694
        %696 = vmatmul.f32.gmra.mxu0 %v297
        %v697 = vpop.f32.mrf.mxu0
        %v698 = vadd.f32 %v382, %v697
        %699 = vmatmul.f32.gmra.mxu0 %v299
        %v700 = vpop.f32.mrf.mxu0
        %v701 = vadd.f32 %v382, %v700
        %702 = vmatmul.f32.gmra.mxu0 %v301
        %v703 = vpop.f32.mrf.mxu0
        %v704 = vadd.f32 %v382, %v703
        %705 = vmatmul.f32.gmra.mxu0 %v303
        %v706 = vpop.f32.mrf.mxu0
        %v707 = vadd.f32 %v382, %v706
        %708 = vmatmul.f32.gmra.mxu0 %v305
        %v709 = vpop.f32.mrf.mxu0
        %v710 = vadd.f32 %v382, %v709
        %711 = vmatmul.f32.gmra.mxu0 %v307
        %v712 = vpop.f32.mrf.mxu0
        %v713 = vadd.f32 %v382, %v712
        %714 = vmatmul.f32.gmra.mxu0 %v309
        %v715 = vpop.f32.mrf.mxu0
        %v716 = vadd.f32 %v382, %v715
        %717 = vmatmul.f32.gmra.mxu0 %v311
        %v718 = vpop.f32.mrf.mxu0
        %v719 = vadd.f32 %v382, %v718
        %720 = vmatmul.f32.gmra.mxu0 %v313
        %v721 = vpop.f32.mrf.mxu0
        %v722 = vadd.f32 %v382, %v721
        %723 = vdwg.mxu0
        %724 = vmatpush.msra.mxu0 %v378
        %725 = vmatpush.msra.mxu0 %v376
        %726 = vmatpush.msra.mxu0 %v374
        %727 = vmatpush.msra.mxu0 %v372
        %728 = vmatpush.msra.mxu0 %v370
        %729 = vmatpush.msra.mxu0 %v368
        %730 = vmatpush.msra.mxu0 %v366
        %731 = vmatpush.msra.mxu0 %v364
        %732 = vmatpush.msra.mxu0 %v362
        %733 = vmatpush.msra.mxu0 %v360
        %734 = vmatpush.msra.mxu0 %v358
        %735 = vmatpush.msra.mxu0 %v356
        %736 = vmatpush.msra.mxu0 %v354
        %737 = vmatpush.msra.mxu0 %v352
        %738 = vmatpush.msra.mxu0 %v350
        %739 = vmatpush.msra.mxu0 %v348
        %740 = vmatmul.f32.gmra.mxu0 %v252
        %v741 = vpop.f32.mrf.mxu0
        %v742 = vadd.f32 %v629, %v741
        %743 = vmatmul.f32.gmra.mxu0 %v254
        %v744 = vpop.f32.mrf.mxu0
        %v745 = vadd.f32 %v632, %v744
        %746 = vmatmul.f32.gmra.mxu0 %v256
        %v747 = vpop.f32.mrf.mxu0
        %v748 = vadd.f32 %v635, %v747
        %749 = vmatmul.f32.gmra.mxu0 %v258
        %v750 = vpop.f32.mrf.mxu0
        %v751 = vadd.f32 %v638, %v750
        %752 = vmatmul.f32.gmra.mxu0 %v260
        %v753 = vpop.f32.mrf.mxu0
        %v754 = vadd.f32 %v641, %v753
        %755 = vmatmul.f32.gmra.mxu0 %v262
        %v756 = vpop.f32.mrf.mxu0
        %v757 = vadd.f32 %v644, %v756
        %758 = vmatmul.f32.gmra.mxu0 %v264
        %v759 = vpop.f32.mrf.mxu0
        %v760 = vadd.f32 %v647, %v759
        %761 = vmatmul.f32.gmra.mxu0 %v266
        %v762 = vpop.f32.mrf.mxu0
        %v763 = vadd.f32 %v650, %v762
        %764 = vmatmul.f32.gmra.mxu0 %v268
        %v765 = vpop.f32.mrf.mxu0
        %v766 = vadd.f32 %v653, %v765
        %767 = vmatmul.f32.gmra.mxu0 %v270
        %v768 = vpop.f32.mrf.mxu0
        %v769 = vadd.f32 %v656, %v768
        %770 = vmatmul.f32.gmra.mxu0 %v272
        %v771 = vpop.f32.mrf.mxu0
        %v772 = vadd.f32 %v659, %v771
        %773 = vmatmul.f32.gmra.mxu0 %v274
        %v774 = vpop.f32.mrf.mxu0
        %v775 = vadd.f32 %v662, %v774
        %776 = vmatmul.f32.gmra.mxu0 %v276
        %v777 = vpop.f32.mrf.mxu0
        %v778 = vadd.f32 %v665, %v777
        %779 = vmatmul.f32.gmra.mxu0 %v278
        %v780 = vpop.f32.mrf.mxu0
        %v781 = vadd.f32 %v668, %v780
        %782 = vmatmul.f32.gmra.mxu0 %v280
        %v783 = vpop.f32.mrf.mxu0
        %v784 = vadd.f32 %v671, %v783
        %785 = vmatmul.f32.gmra.mxu0 %v282
        %v786 = vpop.f32.mrf.mxu0
        %v787 = vadd.f32 %v674, %v786
        %788 = vmatmul.f32.gmra.mxu0 %v284
        %v789 = vpop.f32.mrf.mxu0
        %v790 = vadd.f32 %v677, %v789
        %791 = vmatmul.f32.gmra.mxu0 %v286
        %v792 = vpop.f32.mrf.mxu0
        %v793 = vadd.f32 %v680, %v792
        %794 = vmatmul.f32.gmra.mxu0 %v288
        %v795 = vpop.f32.mrf.mxu0
        %v796 = vadd.f32 %v683, %v795
        %797 = vmatmul.f32.gmra.mxu0 %v290
        %v798 = vpop.f32.mrf.mxu0
        %v799 = vadd.f32 %v686, %v798
        %800 = vmatmul.f32.gmra.mxu0 %v292
        %v801 = vpop.f32.mrf.mxu0
        %v802 = vadd.f32 %v689, %v801
        %803 = vmatmul.f32.gmra.mxu0 %v294
        %v804 = vpop.f32.mrf.mxu0
        %v805 = vadd.f32 %v692, %v804
        %806 = vmatmul.f32.gmra.mxu0 %v296
        %v807 = vpop.f32.mrf.mxu0
        %v808 = vadd.f32 %v695, %v807
        %809 = vmatmul.f32.gmra.mxu0 %v298
        %v810 = vpop.f32.mrf.mxu0
        %v811 = vadd.f32 %v698, %v810
        %812 = vmatmul.f32.gmra.mxu0 %v300
        %v813 = vpop.f32.mrf.mxu0
        %v814 = vadd.f32 %v701, %v813
        %815 = vmatmul.f32.gmra.mxu0 %v302
        %v816 = vpop.f32.mrf.mxu0
        %v817 = vadd.f32 %v704, %v816
        %818 = vmatmul.f32.gmra.mxu0 %v304
        %v819 = vpop.f32.mrf.mxu0
        %v820 = vadd.f32 %v707, %v819
        %821 = vmatmul.f32.gmra.mxu0 %v306
        %v822 = vpop.f32.mrf.mxu0
        %v823 = vadd.f32 %v710, %v822
        %824 = vmatmul.f32.gmra.mxu0 %v308
        %v825 = vpop.f32.mrf.mxu0
        %v826 = vadd.f32 %v713, %v825
        %827 = vmatmul.f32.gmra.mxu0 %v310
        %v828 = vpop.f32.mrf.mxu0
        %v829 = vadd.f32 %v716, %v828
        %830 = vmatmul.f32.gmra.mxu0 %v312
        %v831 = vpop.f32.mrf.mxu0
        %v832 = vadd.f32 %v719, %v831
        %833 = vmatmul.f32.gmra.mxu0 %v314
        %v834 = vpop.f32.mrf.mxu0
        %v835 = vadd.f32 %v722, %v834
        %836 = vdwg.mxu0
        %v837 = vtanh.pop %v516
        %v838 = vtanh.pop %v742
        %v839 = vtanh.pop %v519
        %v840 = vtanh.pop %v745
        %v841 = vtanh.pop %v522
        %v842 = vtanh.pop %v748
        %v843 = vtanh.pop %v525
        %v844 = vtanh.pop %v751
        %v845 = vtanh.pop %v528
        %v846 = vtanh.pop %v754
        %v847 = vtanh.pop %v531
        %v848 = vtanh.pop %v757
        %v849 = vtanh.pop %v534
        %v850 = vtanh.pop %v760
        %v851 = vtanh.pop %v537
        %v852 = vtanh.pop %v763
        %v853 = vtanh.pop %v540
        %v854 = vtanh.pop %v766
        %v855 = vtanh.pop %v543
        %v856 = vtanh.pop %v769
        %v857 = vtanh.pop %v546
        %v858 = vtanh.pop %v772
        %v859 = vtanh.pop %v549
        %v860 = vtanh.pop %v775
        %v861 = vtanh.pop %v552
        %v862 = vtanh.pop %v778
        %v863 = vtanh.pop %v555
        %v864 = vtanh.pop %v781
        %v865 = vtanh.pop %v558
        %v866 = vtanh.pop %v784
        %v867 = vtanh.pop %v561
        %v868 = vtanh.pop %v787
        %v869 = vtanh.pop %v564
        %v870 = vtanh.pop %v790
        %v871 = vtanh.pop %v567
        %v872 = vtanh.pop %v793
        %v873 = vtanh.pop %v570
        %v874 = vtanh.pop %v796
        %v875 = vtanh.pop %v573
        %v876 = vtanh.pop %v799
        %v877 = vtanh.pop %v576
        %v878 = vtanh.pop %v802
        %v879 = vtanh.pop %v579
        %v880 = vtanh.pop %v805
        %v881 = vtanh.pop %v582
        %v882 = vtanh.pop %v808
        %v883 = vtanh.pop %v585
        %v884 = vtanh.pop %v811
        %v885 = vtanh.pop %v588
        %v886 = vtanh.pop %v814
        %v887 = vtanh.pop %v591
        %v888 = vtanh.pop %v817
        %v889 = vtanh.pop %v594
        %v890 = vtanh.pop %v820
        %v891 = vtanh.pop %v597
        %v892 = vtanh.pop %v823
        %v893 = vtanh.pop %v600
        %v894 = vtanh.pop %v826
        %v895 = vtanh.pop %v603
        %v896 = vtanh.pop %v829
        %v897 = vtanh.pop %v606
        %v898 = vtanh.pop %v832
        %v899 = vtanh.pop %v609
        %v900 = vtanh.pop %v835
        %v901 = vmul.f32 %v838, 0.5
        %v902 = vmul.f32 %v840, 0.5
        %v903 = vmul.f32 %v842, 0.5
        %v904 = vmul.f32 %v844, 0.5
        %v905 = vmul.f32 %v846, 0.5
        %v906 = vmul.f32 %v848, 0.5
        %v907 = vmul.f32 %v850, 0.5
        %v908 = vmul.f32 %v852, 0.5
        %v909 = vmul.f32 %v854, 0.5
        %v910 = vmul.f32 %v856, 0.5
        %v911 = vmul.f32 %v858, 0.5
        %v912 = vmul.f32 %v860, 0.5
        %v913 = vmul.f32 %v862, 0.5
        %v914 = vmul.f32 %v864, 0.5
        %v915 = vmul.f32 %v866, 0.5
        %v916 = vmul.f32 %v868, 0.5
        %v917 = vmul.f32 %v870, 0.5
        %v918 = vmul.f32 %v872, 0.5
        %v919 = vmul.f32 %v874, 0.5
        %v920 = vmul.f32 %v876, 0.5
        %v921 = vmul.f32 %v878, 0.5
        %v922 = vmul.f32 %v880, 0.5
        %v923 = vmul.f32 %v882, 0.5
        %v924 = vmul.f32 %v884, 0.5
        %v925 = vmul.f32 %v886, 0.5
        %v926 = vmul.f32 %v888, 0.5
        %v927 = vmul.f32 %v890, 0.5
        %v928 = vmul.f32 %v892, 0.5
        %v929 = vmul.f32 %v894, 0.5
        %v930 = vmul.f32 %v896, 0.5
        %v931 = vmul.f32 %v898, 0.5
        %v932 = vmul.f32 %v900, 0.5
        %v933 = vadd.f32 %v901, 0.5
        %v934 = vadd.f32 %v902, 0.5
        %v935 = vadd.f32 %v903, 0.5
        %v936 = vadd.f32 %v904, 0.5
        %v937 = vadd.f32 %v905, 0.5
        %v938 = vadd.f32 %v906, 0.5
        %v939 = vadd.f32 %v907, 0.5
        %v940 = vadd.f32 %v908, 0.5
        %v941 = vadd.f32 %v909, 0.5
        %v942 = vadd.f32 %v910, 0.5
        %v943 = vadd.f32 %v911, 0.5
        %v944 = vadd.f32 %v912, 0.5
        %v945 = vadd.f32 %v913, 0.5
        %v946 = vadd.f32 %v914, 0.5
        %v947 = vadd.f32 %v915, 0.5
        %v948 = vadd.f32 %v916, 0.5
        %v949 = vadd.f32 %v917, 0.5
        %v950 = vadd.f32 %v918, 0.5
        %v951 = vadd.f32 %v919, 0.5
        %v952 = vadd.f32 %v920, 0.5
        %v953 = vadd.f32 %v921, 0.5
        %v954 = vadd.f32 %v922, 0.5
        %v955 = vadd.f32 %v923, 0.5
        %v956 = vadd.f32 %v924, 0.5
        %v957 = vadd.f32 %v925, 0.5
        %v958 = vadd.f32 %v926, 0.5
        %v959 = vadd.f32 %v927, 0.5
        %v960 = vadd.f32 %v928, 0.5
        %v961 = vadd.f32 %v929, 0.5
        %v962 = vadd.f32 %v930, 0.5
        %v963 = vadd.f32 %v931, 0.5
        %v964 = vadd.f32 %v932, 0.5
        %v965 = vmul.f32 %v837, %v933
        %v966 = vmul.f32 %v839, %v934
        %v967 = vmul.f32 %v841, %v935
        %v968 = vmul.f32 %v843, %v936
        %v969 = vmul.f32 %v845, %v937
        %v970 = vmul.f32 %v847, %v938
        %v971 = vmul.f32 %v849, %v939
        %v972 = vmul.f32 %v851, %v940
        %v973 = vmul.f32 %v853, %v941
        %v974 = vmul.f32 %v855, %v942
        %v975 = vmul.f32 %v857, %v943
        %v976 = vmul.f32 %v859, %v944
        %v977 = vmul.f32 %v861, %v945
        %v978 = vmul.f32 %v863, %v946
        %v979 = vmul.f32 %v865, %v947
        %v980 = vmul.f32 %v867, %v948
        %v981 = vmul.f32 %v869, %v949
        %v982 = vmul.f32 %v871, %v950
        %v983 = vmul.f32 %v873, %v951
        %v984 = vmul.f32 %v875, %v952
        %v985 = vmul.f32 %v877, %v953
        %v986 = vmul.f32 %v879, %v954
        %v987 = vmul.f32 %v881, %v955
        %v988 = vmul.f32 %v883, %v956
        %v989 = vmul.f32 %v885, %v957
        %v990 = vmul.f32 %v887, %v958
        %v991 = vmul.f32 %v889, %v959
        %v992 = vmul.f32 %v891, %v960
        %v993 = vmul.f32 %v893, %v961
        %v994 = vmul.f32 %v895, %v962
        %v995 = vmul.f32 %v897, %v963
        %v996 = vmul.f32 %v899, %v964
        %v997 = vld [vmem:[%s3] sm:$0x1]
        %v999 = vperm.slane %v997, 0
        %v1001 = vmul.f32 %v965, %v999
        %v1002 = vmul.f32 %v966, %v999
        %v1003 = vmul.f32 %v967, %v999
        %v1004 = vmul.f32 %v968, %v999
        %v1005 = vmul.f32 %v969, %v999
        %v1006 = vmul.f32 %v970, %v999
        %v1007 = vmul.f32 %v971, %v999
        %v1008 = vmul.f32 %v972, %v999
        %v1009 = vmul.f32 %v973, %v999
        %v1010 = vmul.f32 %v974, %v999
        %v1011 = vmul.f32 %v975, %v999
        %v1012 = vmul.f32 %v976, %v999
        %v1013 = vmul.f32 %v977, %v999
        %v1014 = vmul.f32 %v978, %v999
        %v1015 = vmul.f32 %v979, %v999
        %v1016 = vmul.f32 %v980, %v999
        %v1017 = vmul.f32 %v981, %v999
        %v1018 = vmul.f32 %v982, %v999
        %v1019 = vmul.f32 %v983, %v999
        %v1020 = vmul.f32 %v984, %v999
        %v1021 = vmul.f32 %v985, %v999
        %v1022 = vmul.f32 %v986, %v999
        %v1023 = vmul.f32 %v987, %v999
        %v1024 = vmul.f32 %v988, %v999
        %v1025 = vmul.f32 %v989, %v999
        %v1026 = vmul.f32 %v990, %v999
        %v1027 = vmul.f32 %v991, %v999
        %v1028 = vmul.f32 %v992, %v999
        %v1029 = vmul.f32 %v993, %v999
        %v1030 = vmul.f32 %v994, %v999
        %v1031 = vmul.f32 %v995, %v999
        %v1032 = vmul.f32 %v996, %v999
        %1033 = vadd.xlane.f32.xlu0 %v1001
        %v1034 = vpop.xlane.xlu0 %1033
        %1035 = vadd.xlane.f32.xlu0 %v1002
        %v1036 = vpop.xlane.xlu0 %1035
        %1037 = vadd.xlane.f32.xlu0 %v1003
        %v1038 = vpop.xlane.xlu0 %1037
        %1039 = vadd.xlane.f32.xlu0 %v1004
        %v1040 = vpop.xlane.xlu0 %1039
        %1041 = vadd.xlane.f32.xlu0 %v1005
        %v1042 = vpop.xlane.xlu0 %1041
        %1043 = vadd.xlane.f32.xlu0 %v1006
        %v1044 = vpop.xlane.xlu0 %1043
        %1045 = vadd.xlane.f32.xlu0 %v1007
        %v1046 = vpop.xlane.xlu0 %1045
        %1047 = vadd.xlane.f32.xlu0 %v1008
        %v1048 = vpop.xlane.xlu0 %1047
        %1049 = vadd.xlane.f32.xlu0 %v1009
        %v1050 = vpop.xlane.xlu0 %1049
        %1051 = vadd.xlane.f32.xlu0 %v1010
        %v1052 = vpop.xlane.xlu0 %1051
        %1053 = vadd.xlane.f32.xlu0 %v1011
        %v1054 = vpop.xlane.xlu0 %1053
        %1055 = vadd.xlane.f32.xlu0 %v1012
        %v1056 = vpop.xlane.xlu0 %1055
        %1057 = vadd.xlane.f32.xlu0 %v1013
        %v1058 = vpop.xlane.xlu0 %1057
        %1059 = vadd.xlane.f32.xlu0 %v1014
        %v1060 = vpop.xlane.xlu0 %1059
        %1061 = vadd.xlane.f32.xlu0 %v1015
        %v1062 = vpop.xlane.xlu0 %1061
        %1063 = vadd.xlane.f32.xlu0 %v1016
        %v1064 = vpop.xlane.xlu0 %1063
        %1065 = vadd.xlane.f32.xlu0 %v1017
        %v1066 = vpop.xlane.xlu0 %1065
        %1067 = vadd.xlane.f32.xlu0 %v1018
        %v1068 = vpop.xlane.xlu0 %1067
        %1069 = vadd.xlane.f32.xlu0 %v1019
        %v1070 = vpop.xlane.xlu0 %1069
        %1071 = vadd.xlane.f32.xlu0 %v1020
        %v1072 = vpop.xlane.xlu0 %1071
        %1073 = vadd.xlane.f32.xlu0 %v1021
        %v1074 = vpop.xlane.xlu0 %1073
        %1075 = vadd.xlane.f32.xlu0 %v1022
        %v1076 = vpop.xlane.xlu0 %1075
        %1077 = vadd.xlane.f32.xlu0 %v1023
        %v1078 = vpop.xlane.xlu0 %1077
        %1079 = vadd.xlane.f32.xlu0 %v1024
        %v1080 = vpop.xlane.xlu0 %1079
        %1081 = vadd.xlane.f32.xlu0 %v1025
        %v1082 = vpop.xlane.xlu0 %1081
        %1083 = vadd.xlane.f32.xlu0 %v1026
        %v1084 = vpop.xlane.xlu0 %1083
        %1085 = vadd.xlane.f32.xlu0 %v1027
        %v1086 = vpop.xlane.xlu0 %1085
        %1087 = vadd.xlane.f32.xlu0 %v1028
        %v1088 = vpop.xlane.xlu0 %1087
        %1089 = vadd.xlane.f32.xlu0 %v1029
        %v1090 = vpop.xlane.xlu0 %1089
        %1091 = vadd.xlane.f32.xlu0 %v1030
        %v1092 = vpop.xlane.xlu0 %1091
        %1093 = vadd.xlane.f32.xlu0 %v1031
        %v1094 = vpop.xlane.xlu0 %1093
        %1095 = vadd.xlane.f32.xlu0 %v1032
        %v1096 = vpop.xlane.xlu0 %1095
        %v1097 = vmax.f32 %v1034, %v1036
        %v1098 = vmax.f32 %v1097, %v1038
        %v1099 = vmax.f32 %v1098, %v1040
        %v1100 = vrot.slane %v1099, 4
        %v1101 = vmax.f32 %v1099, %v1100
        %v1102 = vrot.slane %v1101, 2
        %v1103 = vmax.f32 %v1101, %v1102
        %v1104 = vrot.slane %v1103, 1
        %v1105 = vmax.f32 %v1103, %v1104
        %v1106 = vmax.f32 %v1042, %v1044
        %v1107 = vmax.f32 %v1106, %v1046
        %v1108 = vmax.f32 %v1107, %v1048
        %v1109 = vrot.slane %v1108, 4
        %v1110 = vmax.f32 %v1108, %v1109
        %v1111 = vrot.slane %v1110, 2
        %v1112 = vmax.f32 %v1110, %v1111
        %v1113 = vrot.slane %v1112, 1
        %v1114 = vmax.f32 %v1112, %v1113
        %v1115 = vmax.f32 %v1050, %v1052
        %v1116 = vmax.f32 %v1115, %v1054
        %v1117 = vmax.f32 %v1116, %v1056
        %v1118 = vrot.slane %v1117, 4
        %v1119 = vmax.f32 %v1117, %v1118
        %v1120 = vrot.slane %v1119, 2
        %v1121 = vmax.f32 %v1119, %v1120
        %v1122 = vrot.slane %v1121, 1
        %v1123 = vmax.f32 %v1121, %v1122
        %v1124 = vmax.f32 %v1058, %v1060
        %v1125 = vmax.f32 %v1124, %v1062
        %v1126 = vmax.f32 %v1125, %v1064
        %v1127 = vrot.slane %v1126, 4
        %v1128 = vmax.f32 %v1126, %v1127
        %v1129 = vrot.slane %v1128, 2
        %v1130 = vmax.f32 %v1128, %v1129
        %v1131 = vrot.slane %v1130, 1
        %v1132 = vmax.f32 %v1130, %v1131
        %v1133 = vmax.f32 %v1066, %v1068
        %v1134 = vmax.f32 %v1133, %v1070
        %v1135 = vmax.f32 %v1134, %v1072
        %v1136 = vrot.slane %v1135, 4
        %v1137 = vmax.f32 %v1135, %v1136
        %v1138 = vrot.slane %v1137, 2
        %v1139 = vmax.f32 %v1137, %v1138
        %v1140 = vrot.slane %v1139, 1
        %v1141 = vmax.f32 %v1139, %v1140
        %v1142 = vmax.f32 %v1074, %v1076
        %v1143 = vmax.f32 %v1142, %v1078
        %v1144 = vmax.f32 %v1143, %v1080
        %v1145 = vrot.slane %v1144, 4
        %v1146 = vmax.f32 %v1144, %v1145
        %v1147 = vrot.slane %v1146, 2
        %v1148 = vmax.f32 %v1146, %v1147
        %v1149 = vrot.slane %v1148, 1
        %v1150 = vmax.f32 %v1148, %v1149
        %v1151 = vmax.f32 %v1082, %v1084
        %v1152 = vmax.f32 %v1151, %v1086
        %v1153 = vmax.f32 %v1152, %v1088
        %v1154 = vrot.slane %v1153, 4
        %v1155 = vmax.f32 %v1153, %v1154
        %v1156 = vrot.slane %v1155, 2
        %v1157 = vmax.f32 %v1155, %v1156
        %v1158 = vrot.slane %v1157, 1
        %v1159 = vmax.f32 %v1157, %v1158
        %v1160 = vmax.f32 %v1090, %v1092
        %v1161 = vmax.f32 %v1160, %v1094
        %v1162 = vmax.f32 %v1161, %v1096
        %v1163 = vrot.slane %v1162, 4
        %v1164 = vmax.f32 %v1162, %v1163
        %v1165 = vrot.slane %v1164, 2
        %v1166 = vmax.f32 %v1164, %v1165
        %v1167 = vrot.slane %v1166, 1
        %v1168 = vmax.f32 %v1166, %v1167
        %v1169 = vsub.f32 %v1034, %v1105
        %v1170 = vsub.f32 %v1036, %v1105
        %v1171 = vsub.f32 %v1038, %v1105
        %v1172 = vsub.f32 %v1040, %v1105
        %v1173 = vsub.f32 %v1042, %v1114
        %v1174 = vsub.f32 %v1044, %v1114
        %v1175 = vsub.f32 %v1046, %v1114
        %v1176 = vsub.f32 %v1048, %v1114
        %v1177 = vsub.f32 %v1050, %v1123
        %v1178 = vsub.f32 %v1052, %v1123
        %v1179 = vsub.f32 %v1054, %v1123
        %v1180 = vsub.f32 %v1056, %v1123
        %v1181 = vsub.f32 %v1058, %v1132
        %v1182 = vsub.f32 %v1060, %v1132
        %v1183 = vsub.f32 %v1062, %v1132
        %v1184 = vsub.f32 %v1064, %v1132
        %v1185 = vsub.f32 %v1066, %v1141
        %v1186 = vsub.f32 %v1068, %v1141
        %v1187 = vsub.f32 %v1070, %v1141
        %v1188 = vsub.f32 %v1072, %v1141
        %v1189 = vsub.f32 %v1074, %v1150
        %v1190 = vsub.f32 %v1076, %v1150
        %v1191 = vsub.f32 %v1078, %v1150
        %v1192 = vsub.f32 %v1080, %v1150
        %v1193 = vsub.f32 %v1082, %v1159
        %v1194 = vsub.f32 %v1084, %v1159
        %v1195 = vsub.f32 %v1086, %v1159
        %v1196 = vsub.f32 %v1088, %v1159
        %v1197 = vsub.f32 %v1090, %v1168
        %v1198 = vsub.f32 %v1092, %v1168
        %v1199 = vsub.f32 %v1094, %v1168
        %v1200 = vsub.f32 %v1096, %v1168
        %v1201 = vmul.f32 %v1169, 1.442695
        %v1202 = vpow.pop %v1201
        %v1203 = vmul.f32 %v1170, 1.442695
        %v1204 = vpow.pop %v1203
        %v1205 = vmul.f32 %v1171, 1.442695
        %v1206 = vpow.pop %v1205
        %v1207 = vmul.f32 %v1172, 1.442695
        %v1208 = vpow.pop %v1207
        %v1209 = vmul.f32 %v1173, 1.442695
        %v1210 = vpow.pop %v1209
        %v1211 = vmul.f32 %v1174, 1.442695
        %v1212 = vpow.pop %v1211
        %v1213 = vmul.f32 %v1175, 1.442695
        %v1214 = vpow.pop %v1213
        %v1215 = vmul.f32 %v1176, 1.442695
        %v1216 = vpow.pop %v1215
        %v1217 = vmul.f32 %v1177, 1.442695
        %v1218 = vpow.pop %v1217
        %v1219 = vmul.f32 %v1178, 1.442695
        %v1220 = vpow.pop %v1219
        %v1221 = vmul.f32 %v1179, 1.442695
        %v1222 = vpow.pop %v1221
        %v1223 = vmul.f32 %v1180, 1.442695
        %v1224 = vpow.pop %v1223
        %v1225 = vmul.f32 %v1181, 1.442695
        %v1226 = vpow.pop %v1225
        %v1227 = vmul.f32 %v1182, 1.442695
        %v1228 = vpow.pop %v1227
        %v1229 = vmul.f32 %v1183, 1.442695
        %v1230 = vpow.pop %v1229
        %v1231 = vmul.f32 %v1184, 1.442695
        %v1232 = vpow.pop %v1231
        %v1233 = vmul.f32 %v1185, 1.442695
        %v1234 = vpow.pop %v1233
        %v1235 = vmul.f32 %v1186, 1.442695
        %v1236 = vpow.pop %v1235
        %v1237 = vmul.f32 %v1187, 1.442695
        %v1238 = vpow.pop %v1237
        %v1239 = vmul.f32 %v1188, 1.442695
        %v1240 = vpow.pop %v1239
        %v1241 = vmul.f32 %v1189, 1.442695
        %v1242 = vpow.pop %v1241
        %v1243 = vmul.f32 %v1190, 1.442695
        %v1244 = vpow.pop %v1243
        %v1245 = vmul.f32 %v1191, 1.442695
        %v1246 = vpow.pop %v1245
        %v1247 = vmul.f32 %v1192, 1.442695
        %v1248 = vpow.pop %v1247
        %v1249 = vmul.f32 %v1193, 1.442695
        %v1250 = vpow.pop %v1249
        %v1251 = vmul.f32 %v1194, 1.442695
        %v1252 = vpow.pop %v1251
        %v1253 = vmul.f32 %v1195, 1.442695
        %v1254 = vpow.pop %v1253
        %v1255 = vmul.f32 %v1196, 1.442695
        %v1256 = vpow.pop %v1255
        %v1257 = vmul.f32 %v1197, 1.442695
        %v1258 = vpow.pop %v1257
        %v1259 = vmul.f32 %v1198, 1.442695
        %v1260 = vpow.pop %v1259
        %v1261 = vmul.f32 %v1199, 1.442695
        %v1262 = vpow.pop %v1261
        %v1263 = vmul.f32 %v1200, 1.442695
        %v1264 = vpow.pop %v1263
        %v1265 = vadd.f32 %v1202, %v1204
        %v1266 = vadd.f32 %v1265, %v1206
        %v1267 = vadd.f32 %v1266, %v1208
        %v1268 = vrot.slane %v1267, 4
        %v1269 = vadd.f32 %v1267, %v1268
        %v1270 = vrot.slane %v1269, 2
        %v1271 = vadd.f32 %v1269, %v1270
        %v1272 = vrot.slane %v1271, 1
        %v1273 = vadd.f32 %v1271, %v1272
        %v1274 = vadd.f32 %v1210, %v1212
        %v1275 = vadd.f32 %v1274, %v1214
        %v1276 = vadd.f32 %v1275, %v1216
        %v1277 = vrot.slane %v1276, 4
        %v1278 = vadd.f32 %v1276, %v1277
        %v1279 = vrot.slane %v1278, 2
        %v1280 = vadd.f32 %v1278, %v1279
        %v1281 = vrot.slane %v1280, 1
        %v1282 = vadd.f32 %v1280, %v1281
        %v1283 = vadd.f32 %v1218, %v1220
        %v1284 = vadd.f32 %v1283, %v1222
        %v1285 = vadd.f32 %v1284, %v1224
        %v1286 = vrot.slane %v1285, 4
        %v1287 = vadd.f32 %v1285, %v1286
        %v1288 = vrot.slane %v1287, 2
        %v1289 = vadd.f32 %v1287, %v1288
        %v1290 = vrot.slane %v1289, 1
        %v1291 = vadd.f32 %v1289, %v1290
        %v1292 = vadd.f32 %v1226, %v1228
        %v1293 = vadd.f32 %v1292, %v1230
        %v1294 = vadd.f32 %v1293, %v1232
        %v1295 = vrot.slane %v1294, 4
        %v1296 = vadd.f32 %v1294, %v1295
        %v1297 = vrot.slane %v1296, 2
        %v1298 = vadd.f32 %v1296, %v1297
        %v1299 = vrot.slane %v1298, 1
        %v1300 = vadd.f32 %v1298, %v1299
        %v1301 = vadd.f32 %v1234, %v1236
        %v1302 = vadd.f32 %v1301, %v1238
        %v1303 = vadd.f32 %v1302, %v1240
        %v1304 = vrot.slane %v1303, 4
        %v1305 = vadd.f32 %v1303, %v1304
        %v1306 = vrot.slane %v1305, 2
        %v1307 = vadd.f32 %v1305, %v1306
        %v1308 = vrot.slane %v1307, 1
        %v1309 = vadd.f32 %v1307, %v1308
        %v1310 = vadd.f32 %v1242, %v1244
        %v1311 = vadd.f32 %v1310, %v1246
        %v1312 = vadd.f32 %v1311, %v1248
        %v1313 = vrot.slane %v1312, 4
        %v1314 = vadd.f32 %v1312, %v1313
        %v1315 = vrot.slane %v1314, 2
        %v1316 = vadd.f32 %v1314, %v1315
        %v1317 = vrot.slane %v1316, 1
        %v1318 = vadd.f32 %v1316, %v1317
        %v1319 = vadd.f32 %v1250, %v1252
        %v1320 = vadd.f32 %v1319, %v1254
        %v1321 = vadd.f32 %v1320, %v1256
        %v1322 = vrot.slane %v1321, 4
        %v1323 = vadd.f32 %v1321, %v1322
        %v1324 = vrot.slane %v1323, 2
        %v1325 = vadd.f32 %v1323, %v1324
        %v1326 = vrot.slane %v1325, 1
        %v1327 = vadd.f32 %v1325, %v1326
        %v1328 = vadd.f32 %v1258, %v1260
        %v1329 = vadd.f32 %v1328, %v1262
        %v1330 = vadd.f32 %v1329, %v1264
        %v1331 = vrot.slane %v1330, 4
        %v1332 = vadd.f32 %v1330, %v1331
        %v1333 = vrot.slane %v1332, 2
        %v1334 = vadd.f32 %v1332, %v1333
        %v1335 = vrot.slane %v1334, 1
        %v1336 = vadd.f32 %v1334, %v1335
        %v1337 = vmul.f32 %v1202, %v251
        %v1338 = vmul.f32 %v1202, %v252
        %v1339 = vmul.f32 %v1204, %v253
        %v1340 = vmul.f32 %v1204, %v254
        %v1341 = vmul.f32 %v1206, %v255
        %v1342 = vmul.f32 %v1206, %v256
        %v1343 = vmul.f32 %v1208, %v257
        %v1344 = vmul.f32 %v1208, %v258
        %v1345 = vmul.f32 %v1210, %v259
        %v1346 = vmul.f32 %v1210, %v260
        %v1347 = vmul.f32 %v1212, %v261
        %v1348 = vmul.f32 %v1212, %v262
        %v1349 = vmul.f32 %v1214, %v263
        %v1350 = vmul.f32 %v1214, %v264
        %v1351 = vmul.f32 %v1216, %v265
        %v1352 = vmul.f32 %v1216, %v266
        %v1353 = vmul.f32 %v1218, %v267
        %v1354 = vmul.f32 %v1218, %v268
        %v1355 = vmul.f32 %v1220, %v269
        %v1356 = vmul.f32 %v1220, %v270
        %v1357 = vmul.f32 %v1222, %v271
        %v1358 = vmul.f32 %v1222, %v272
        %v1359 = vmul.f32 %v1224, %v273
        %v1360 = vmul.f32 %v1224, %v274
        %v1361 = vmul.f32 %v1226, %v275
        %v1362 = vmul.f32 %v1226, %v276
        %v1363 = vmul.f32 %v1228, %v277
        %v1364 = vmul.f32 %v1228, %v278
        %v1365 = vmul.f32 %v1230, %v279
        %v1366 = vmul.f32 %v1230, %v280
        %v1367 = vmul.f32 %v1232, %v281
        %v1368 = vmul.f32 %v1232, %v282
        %v1369 = vmul.f32 %v1234, %v283
        %v1370 = vmul.f32 %v1234, %v284
        %v1371 = vmul.f32 %v1236, %v285
        %v1372 = vmul.f32 %v1236, %v286
        %v1373 = vmul.f32 %v1238, %v287
        %v1374 = vmul.f32 %v1238, %v288
        %v1375 = vmul.f32 %v1240, %v289
        %v1376 = vmul.f32 %v1240, %v290
        %v1377 = vmul.f32 %v1242, %v291
        %v1378 = vmul.f32 %v1242, %v292
        %v1379 = vmul.f32 %v1244, %v293
        %v1380 = vmul.f32 %v1244, %v294
        %v1381 = vmul.f32 %v1246, %v295
        %v1382 = vmul.f32 %v1246, %v296
        %v1383 = vmul.f32 %v1248, %v297
        %v1384 = vmul.f32 %v1248, %v298
        %v1385 = vmul.f32 %v1250, %v299
        %v1386 = vmul.f32 %v1250, %v300
        %v1387 = vmul.f32 %v1252, %v301
        %v1388 = vmul.f32 %v1252, %v302
        %v1389 = vmul.f32 %v1254, %v303
        %v1390 = vmul.f32 %v1254, %v304
        %v1391 = vmul.f32 %v1256, %v305
        %v1392 = vmul.f32 %v1256, %v306
        %v1393 = vmul.f32 %v1258, %v307
        %v1394 = vmul.f32 %v1258, %v308
        %v1395 = vmul.f32 %v1260, %v309
        %v1396 = vmul.f32 %v1260, %v310
        %v1397 = vmul.f32 %v1262, %v311
        %v1398 = vmul.f32 %v1262, %v312
        %v1399 = vmul.f32 %v1264, %v313
        %v1400 = vmul.f32 %v1264, %v314
        %v1401 = vadd.f32 %v1337, %v1339
        %v1402 = vadd.f32 %v1401, %v1341
        %v1403 = vadd.f32 %v1402, %v1343
        %v1404 = vrot.slane %v1403, 4
        %v1405 = vadd.f32 %v1403, %v1404
        %v1406 = vrot.slane %v1405, 2
        %v1407 = vadd.f32 %v1405, %v1406
        %v1408 = vrot.slane %v1407, 1
        %v1409 = vadd.f32 %v1407, %v1408
        %v1410 = vadd.f32 %v1338, %v1340
        %v1411 = vadd.f32 %v1410, %v1342
        %v1412 = vadd.f32 %v1411, %v1344
        %v1413 = vrot.slane %v1412, 4
        %v1414 = vadd.f32 %v1412, %v1413
        %v1415 = vrot.slane %v1414, 2
        %v1416 = vadd.f32 %v1414, %v1415
        %v1417 = vrot.slane %v1416, 1
        %v1418 = vadd.f32 %v1416, %v1417
        %v1419 = vadd.f32 %v1345, %v1347
        %v1420 = vadd.f32 %v1419, %v1349
        %v1421 = vadd.f32 %v1420, %v1351
        %v1422 = vrot.slane %v1421, 4
        %v1423 = vadd.f32 %v1421, %v1422
        %v1424 = vrot.slane %v1423, 2
        %v1425 = vadd.f32 %v1423, %v1424
        %v1426 = vrot.slane %v1425, 1
        %v1427 = vadd.f32 %v1425, %v1426
        %v1428 = vadd.f32 %v1346, %v1348
        %v1429 = vadd.f32 %v1428, %v1350
        %v1430 = vadd.f32 %v1429, %v1352
        %v1431 = vrot.slane %v1430, 4
        %v1432 = vadd.f32 %v1430, %v1431
        %v1433 = vrot.slane %v1432, 2
        %v1434 = vadd.f32 %v1432, %v1433
        %v1435 = vrot.slane %v1434, 1
        %v1436 = vadd.f32 %v1434, %v1435
        %v1437 = vadd.f32 %v1353, %v1355
        %v1438 = vadd.f32 %v1437, %v1357
        %v1439 = vadd.f32 %v1438, %v1359
        %v1440 = vrot.slane %v1439, 4
        %v1441 = vadd.f32 %v1439, %v1440
        %v1442 = vrot.slane %v1441, 2
        %v1443 = vadd.f32 %v1441, %v1442
        %v1444 = vrot.slane %v1443, 1
        %v1445 = vadd.f32 %v1443, %v1444
        %v1446 = vadd.f32 %v1354, %v1356
        %v1447 = vadd.f32 %v1446, %v1358
        %v1448 = vadd.f32 %v1447, %v1360
        %v1449 = vrot.slane %v1448, 4
        %v1450 = vadd.f32 %v1448, %v1449
        %v1451 = vrot.slane %v1450, 2
        %v1452 = vadd.f32 %v1450, %v1451
        %v1453 = vrot.slane %v1452, 1
        %v1454 = vadd.f32 %v1452, %v1453
        %v1455 = vadd.f32 %v1361, %v1363
        %v1456 = vadd.f32 %v1455, %v1365
        %v1457 = vadd.f32 %v1456, %v1367
        %v1458 = vrot.slane %v1457, 4
        %v1459 = vadd.f32 %v1457, %v1458
        %v1460 = vrot.slane %v1459, 2
        %v1461 = vadd.f32 %v1459, %v1460
        %v1462 = vrot.slane %v1461, 1
        %v1463 = vadd.f32 %v1461, %v1462
        %v1464 = vadd.f32 %v1362, %v1364
        %v1465 = vadd.f32 %v1464, %v1366
        %v1466 = vadd.f32 %v1465, %v1368
        %v1467 = vrot.slane %v1466, 4
        %v1468 = vadd.f32 %v1466, %v1467
        %v1469 = vrot.slane %v1468, 2
        %v1470 = vadd.f32 %v1468, %v1469
        %v1471 = vrot.slane %v1470, 1
        %v1472 = vadd.f32 %v1470, %v1471
        %v1473 = vadd.f32 %v1369, %v1371
        %v1474 = vadd.f32 %v1473, %v1373
        %v1475 = vadd.f32 %v1474, %v1375
        %v1476 = vrot.slane %v1475, 4
        %v1477 = vadd.f32 %v1475, %v1476
        %v1478 = vrot.slane %v1477, 2
        %v1479 = vadd.f32 %v1477, %v1478
        %v1480 = vrot.slane %v1479, 1
        %v1481 = vadd.f32 %v1479, %v1480
        %v1482 = vadd.f32 %v1370, %v1372
        %v1483 = vadd.f32 %v1482, %v1374
        %v1484 = vadd.f32 %v1483, %v1376
        %v1485 = vrot.slane %v1484, 4
        %v1486 = vadd.f32 %v1484, %v1485
        %v1487 = vrot.slane %v1486, 2
        %v1488 = vadd.f32 %v1486, %v1487
        %v1489 = vrot.slane %v1488, 1
        %v1490 = vadd.f32 %v1488, %v1489
        %v1491 = vadd.f32 %v1377, %v1379
        %v1492 = vadd.f32 %v1491, %v1381
        %v1493 = vadd.f32 %v1492, %v1383
        %v1494 = vrot.slane %v1493, 4
        %v1495 = vadd.f32 %v1493, %v1494
        %v1496 = vrot.slane %v1495, 2
        %v1497 = vadd.f32 %v1495, %v1496
        %v1498 = vrot.slane %v1497, 1
        %v1499 = vadd.f32 %v1497, %v1498
        %v1500 = vadd.f32 %v1378, %v1380
        %v1501 = vadd.f32 %v1500, %v1382
        %v1502 = vadd.f32 %v1501, %v1384
        %v1503 = vrot.slane %v1502, 4
        %v1504 = vadd.f32 %v1502, %v1503
        %v1505 = vrot.slane %v1504, 2
        %v1506 = vadd.f32 %v1504, %v1505
        %v1507 = vrot.slane %v1506, 1
        %v1508 = vadd.f32 %v1506, %v1507
        %v1509 = vadd.f32 %v1385, %v1387
        %v1510 = vadd.f32 %v1509, %v1389
        %v1511 = vadd.f32 %v1510, %v1391
        %v1512 = vrot.slane %v1511, 4
        %v1513 = vadd.f32 %v1511, %v1512
        %v1514 = vrot.slane %v1513, 2
        %v1515 = vadd.f32 %v1513, %v1514
        %v1516 = vrot.slane %v1515, 1
        %v1517 = vadd.f32 %v1515, %v1516
        %v1518 = vadd.f32 %v1386, %v1388
        %v1519 = vadd.f32 %v1518, %v1390
        %v1520 = vadd.f32 %v1519, %v1392
        %v1521 = vrot.slane %v1520, 4
        %v1522 = vadd.f32 %v1520, %v1521
        %v1523 = vrot.slane %v1522, 2
        %v1524 = vadd.f32 %v1522, %v1523
        %v1525 = vrot.slane %v1524, 1
        %v1526 = vadd.f32 %v1524, %v1525
        %v1527 = vadd.f32 %v1393, %v1395
        %v1528 = vadd.f32 %v1527, %v1397
        %v1529 = vadd.f32 %v1528, %v1399
        %v1530 = vrot.slane %v1529, 4
        %v1531 = vadd.f32 %v1529, %v1530
        %v1532 = vrot.slane %v1531, 2
        %v1533 = vadd.f32 %v1531, %v1532
        %v1534 = vrot.slane %v1533, 1
        %v1535 = vadd.f32 %v1533, %v1534
        %v1536 = vadd.f32 %v1394, %v1396
        %v1537 = vadd.f32 %v1536, %v1398
        %v1538 = vadd.f32 %v1537, %v1400
        %v1539 = vrot.slane %v1538, 4
        %v1540 = vadd.f32 %v1538, %v1539
        %v1541 = vrot.slane %v1540, 2
        %v1542 = vadd.f32 %v1540, %v1541
        %v1543 = vrot.slane %v1542, 1
        %v1544 = vadd.f32 %v1542, %v1543
        %v1545 = vrcp.pop %v1273
        %v1546 = vrcp.pop %v1282
        %v1547 = vrcp.pop %v1291
        %v1548 = vrcp.pop %v1300
        %v1549 = vrcp.pop %v1309
        %v1550 = vrcp.pop %v1318
        %v1551 = vrcp.pop %v1327
        %v1552 = vrcp.pop %v1336
        %v1553 = vmul.f32 %v1409, %v1545
        %v1554 = vmul.f32 %v1418, %v1545
        %v1555 = vmul.f32 %v1427, %v1546
        %v1556 = vmul.f32 %v1436, %v1546
        %v1557 = vmul.f32 %v1445, %v1547
        %v1558 = vmul.f32 %v1454, %v1547
        %v1559 = vmul.f32 %v1463, %v1548
        %v1560 = vmul.f32 %v1472, %v1548
        %v1561 = vmul.f32 %v1481, %v1549
        %v1562 = vmul.f32 %v1490, %v1549
        %v1563 = vmul.f32 %v1499, %v1550
        %v1564 = vmul.f32 %v1508, %v1550
        %v1565 = vmul.f32 %v1517, %v1551
        %v1566 = vmul.f32 %v1526, %v1551
        %v1567 = vmul.f32 %v1535, %v1552
        %v1568 = vmul.f32 %v1544, %v1552
        %vm1585 = vcmask 1041409
        %v1586 = vsel %vm1585, %v1555, %v1553
        %vm1587 = vcmask 1042434
        %v1588 = vsel %vm1587, %v1557, %v1586
        %vm1589 = vcmask 1043459
        %v1590 = vsel %vm1589, %v1559, %v1588
        %vm1591 = vcmask 1044484
        %v1592 = vsel %vm1591, %v1561, %v1590
        %vm1593 = vcmask 1045509
        %v1594 = vsel %vm1593, %v1563, %v1592
        %vm1595 = vcmask 1046534
        %v1596 = vsel %vm1595, %v1565, %v1594
        %vm1597 = vcmask 1047559
        %v1598 = vsel %vm1597, %v1567, %v1596
        %v1599 = vsel %vm1585, %v1556, %v1554
        %v1600 = vsel %vm1587, %v1558, %v1599
        %v1601 = vsel %vm1589, %v1560, %v1600
        %v1602 = vsel %vm1591, %v1562, %v1601
        %v1603 = vsel %vm1593, %v1564, %v1602
        %v1604 = vsel %vm1595, %v1566, %v1603
        %v1605 = vsel %vm1597, %v1568, %v1604
        %1608 = vst [vmem:[%s249] sm:$0xff] %v1598
        %1609 = vst [vmem:[%s249 + $0x8] sm:$0xff] %v1605
        %s1610 = sand.u32 %s119, 1
        %s1611 = scalar_lea.sflag [#allocation4], %s1610
        %s1612 = sand.u32 %s119, 1
        %s1613 = smul.addr %s1612, 16
        %s1614 = scalar_lea.vmem [#allocation8], %s1613
        // Predicated region
        $region49: #{tpu_custom_call.1} parent=35 // pred_check
          %p1615 = pneg %p129
        $region50: #{tpu_custom_call.1} parent=35 // pred_check_branch
          %1617 = sbr.rel (%p1615) target = $region52
        $region51: #{tpu_custom_call.1} parent=35 // pred_region
          %1619 = vsyncadd %s1611, 0
          %s1620 = smul.addr %s22, 2
          %s1621 = smul.addr %s1620, 8
          %s1622 = scalar_lea.hbm %s4, %s1621
          %s1624 = sshll.u32 %s1614, 4
          %s1625 = int_to_ptr.vmem [resolvable:$true] %s1624
          %s1626 = sshll.u32 %s1622, 4
          %s1627 = int_to_ptr.hbm [resolvable:$true] %s1626
          %1629 = dma.vmem_to_hbm [thread:$0]  %s1625, 256, %s1627, %s1611
        $region52: #{tpu_custom_call.1} parent=35 // pred_fallthru
          _
      $region36: #{tpu_custom_call.1} parent=5 // pred_fallthru
        _
      %p1630 = scmp.le.s32.totalorder 2, %s17
      // Predicated region
      $region53: #{tpu_custom_call.1} parent=5 // pred_check
        %p1631 = pneg %p1630
      $region54: #{tpu_custom_call.1} parent=5 // pred_check_branch
        %1633 = sbr.rel (%p1631) target = $region56
      $region55: #{tpu_custom_call.1} parent=5 // pred_region
        %s1634 = ssub.s32 %s17, 2
        // Predicated region
        $region57: #{tpu_custom_call.1} parent=55 // pred_check
          %p1635 = pneg %p135
        $region58: #{tpu_custom_call.1} parent=55 // pred_check_branch
          %1637 = sbr.rel (%p1635) target = $region60
        $region59: #{tpu_custom_call.1} parent=55 // pred_region
          %s1638 = sand.u32 %s120, 1
          %s1639 = scalar_lea.sflag [#allocation4], %s1638
          %s1640 = sand.u32 %s120, 1
          %s1641 = smul.addr %s1640, 16
          %s1642 = scalar_lea.vmem [#allocation8], %s1641
          %1644 = dma.done %s1639, 256
        $region60: #{tpu_custom_call.1} parent=55 // pred_fallthru
          _
      $region56: #{tpu_custom_call.1} parent=5 // pred_fallthru
        _
    $region6: #{tpu_custom_call.1} parent=1 // loop_footer
      %s21 = sadd.s32 1, %s17
    $region7: #{tpu_custom_call.1} parent=1 // loop_footer_branch
      %16 = sbr.rel target = $region3
    $region8: #{tpu_custom_call.1} parent=1 // loop_exit
      _
    %1645 = vsyncpa [#allocation3], 1
    %s1646 = scalar_lea.sflag [#allocation3], 1
    %1647 = vsyncpa %s1646, 1
    %1648 = vsyncpa [#allocation6], 1
    %1649 = vsyncpa [#allocation4], 1
    %s1650 = scalar_lea.sflag [#allocation4], 1
    %1651 = vsyncpa %s1650, 1

</llo_original>
